<compile_context>
chip_gen: v6e
topology: v6e:2x2x1
jax: 0.10.0
libtpu: 0.0.40
codegen_flags: <defaults>
</compile_context>

<pallas_src>
import functools

import jax
import jax.numpy as jnp
from jax import lax
from jax.experimental import pallas as pl
from jax.experimental.pallas import tpu as pltpu


# ----------------------------------------------------------------------------
# helpers
# ----------------------------------------------------------------------------
def _resident(shape):
    """BlockSpec for a weight that stays resident across all grid steps."""
    zeros = (0,) * len(shape)
    return pl.BlockSpec(shape, lambda *_: zeros)


def _row_tile(n_rows, max_tile=512, align=16):
    """Largest bf16-aligned row tile dividing n_rows, preferring >=2 grid steps."""
    divs = [d for d in range(align, min(max_tile, n_rows) + 1, align)
            if n_rows % d == 0]
    if not divs:
        return n_rows                       # block == full dim is always legal
    multi = [d for d in divs if n_rows // d >= 2]
    return max(multi) if multi else max(divs)


def _vmem_budget(resident_bytes, tile_bytes):
    """Resident weights + double-buffered tiles, 2x headroom, <= 48 MiB (v7x-safe)."""
    need = 2 * (resident_bytes + 2 * tile_bytes)
    return int(min(max(need, 16 * 2**20), 48 * 2**20))


# ----------------------------------------------------------------------------
# Kernel 1: fused q/k/v projection over row tiles of (B*T, K)
# ----------------------------------------------------------------------------
def qkv_kernel(x_ref, wqkv_ref, o_ref):
    # x: (TM, K) bf16, wqkv: (K, 3K) bf16 (scale already folded in), out bf16
    o_ref[...] = jnp.dot(x_ref[...], wqkv_ref[...],
                         preferred_element_type=jnp.float32).astype(o_ref.dtype)


def run_qkv(x2d, wqkv, *, tm):
    n, k = x2d.shape
    k3 = wqkv.shape[1]
    vmem = _vmem_budget(wqkv.size * wqkv.dtype.itemsize, tm * (k + k3) * 2)
    return pl.pallas_call(
        qkv_kernel,
        out_shape=jax.ShapeDtypeStruct((n, k3), x2d.dtype),
        grid_spec=pltpu.PrefetchScalarGridSpec(
            num_scalar_prefetch=0,
            grid=(n // tm,),
            in_specs=[pl.BlockSpec((tm, k), lambda i: (i, 0)),
                      _resident((k, k3))],
            out_specs=pl.BlockSpec((tm, k3), lambda i: (i, 0)),
        ),
        compiler_params=pltpu.CompilerParams(
            dimension_semantics=("parallel",),
            vmem_limit_bytes=vmem),
    )(x2d, wqkv)


# ----------------------------------------------------------------------------
# Kernel 2: masked softmax attention, one batch element per (parallel) grid step
# ----------------------------------------------------------------------------
def attention_kernel(qkv_ref, o_ref, *, k):
    qkv = qkv_ref[0]                                  # (T, 3K) bf16
    q = qkv[:, :k]
    kk = qkv[:, k:2 * k]
    v = qkv[:, 2 * k:]

    # (T, T) scores: contract last dims directly -- no explicit key transpose.
    scores = lax.dot_general(q, kk, (((1,), (1,)), ((), ())),
                             preferred_element_type=jnp.float32)

    t = scores.shape[0]
    row = lax.broadcasted_iota(jnp.int32, (t, t), 0)
    col = lax.broadcasted_iota(jnp.int32, (t, t), 1)
    scores = jnp.where(col > row, -jnp.inf, scores)   # causal mask (diag kept)

    # softmax in f32 (v5e-safe), normalize via EUP reciprocal.
    scores = scores - jnp.max(scores, axis=-1, keepdims=True)
    p = jnp.exp(scores)
    p = p * pl.reciprocal(jnp.sum(p, axis=-1, keepdims=True), approx=True)

    attn = jnp.dot(p.astype(v.dtype), v, preferred_element_type=jnp.float32)
    o_ref[0] = attn.astype(o_ref.dtype)


def run_attention(qkv, k):
    b, t, k3 = qkv.shape
    return pl.pallas_call(
        functools.partial(attention_kernel, k=k),
        out_shape=jax.ShapeDtypeStruct((b, t, k), qkv.dtype),
        grid_spec=pltpu.PrefetchScalarGridSpec(
            num_scalar_prefetch=0,
            grid=(b,),
            in_specs=[pl.BlockSpec((1, t, k3), lambda i: (i, 0, 0))],
            out_specs=pl.BlockSpec((1, t, k), lambda i: (i, 0, 0)),
        ),
        compiler_params=pltpu.CompilerParams(
            dimension_semantics=("parallel",)),
    )(qkv)


# ----------------------------------------------------------------------------
# Kernel 3: unifyheads + residual + FF + residual + to_pixels, fused per row tile
# ----------------------------------------------------------------------------
def post_kernel(x_ref, attn_ref, wu_ref, bu_ref, w1_ref, b1_ref, w2_ref, b2_ref,
                pw1_ref, pb1_ref, pw2_ref, pb2_ref, o_ref):
    f32 = jnp.float32
    bf = x_ref.dtype
    x = x_ref[...]                                    # (TM, K) bf16
    a = attn_ref[...]                                 # (TM, K) bf16

    # unifyheads (Linear with bias) + residual
    y = jnp.dot(a, wu_ref[...], preferred_element_type=f32) + bu_ref[...]
    x1 = x.astype(f32) + y                            # f32 residual path

    # feed-forward: Linear -> ReLU -> Linear, + residual
    h = jnp.dot(x1.astype(bf), w1_ref[...], preferred_element_type=f32) + b1_ref[...]
    h = jnp.maximum(h, 0.0).astype(bf)
    x2 = x1 + jnp.dot(h, w2_ref[...], preferred_element_type=f32) + b2_ref[...]

    # to_pixels head: Linear(k,4k) -> Linear(4k,k), fused (no HBM round trip)
    g = jnp.dot(x2.astype(bf), pw1_ref[...], preferred_element_type=f32) + pb1_ref[...]
    px = jnp.dot(g.astype(bf), pw2_ref[...], preferred_element_type=f32) + pb2_ref[...]

    o_ref[...] = px.astype(o_ref.dtype)


def run_post(x2d, attn2d, params, *, tm):
    n, k = x2d.shape
    kf = 4 * k
    w_names = ("wu", "bu", "ff_w1", "ff_b1", "ff_w2", "ff_b2",
               "px_w1", "px_b1", "px_w2", "px_b2")
    w_bytes = sum(params[nm].size * params[nm].dtype.itemsize for nm in w_names)
    act_bytes = tm * k * (2 + 2 + 4) + tm * kf * 4
    vmem = _vmem_budget(w_bytes, act_bytes)

    in_specs = [
        pl.BlockSpec((tm, k), lambda i: (i, 0)),      # x rows
        pl.BlockSpec((tm, k), lambda i: (i, 0)),      # attn rows
        _resident((k, k)),  _resident((1, k)),        # wu, bu
        _resident((k, kf)), _resident((1, kf)),       # ff w1, b1
        _resident((kf, k)), _resident((1, k)),        # ff w2, b2
        _resident((k, kf)), _resident((1, kf)),       # px w1, b1
        _resident((kf, k)), _resident((1, k)),        # px w2, b2
    ]
    return pl.pallas_call(
        post_kernel,
        out_shape=jax.ShapeDtypeStruct((n, k), jnp.float32),
        grid_spec=pltpu.PrefetchScalarGridSpec(
            num_scalar_prefetch=0,
            grid=(n // tm,),
            in_specs=in_specs,
            out_specs=pl.BlockSpec((tm, k), lambda i: (i, 0)),
        ),
        compiler_params=pltpu.CompilerParams(
            dimension_semantics=("parallel",),
            vmem_limit_bytes=vmem),
    )(x2d, attn2d,
      params["wu"], params["bu"],
      params["ff_w1"], params["ff_b1"], params["ff_w2"], params["ff_b2"],
      params["px_w1"], params["px_b1"], params["px_w2"], params["px_b2"])


# ----------------------------------------------------------------------------
# Forward pass (depth=1, residual=True, norm=False, masked=True)
# ----------------------------------------------------------------------------
@jax.jit
def vm_decoder_forward(x, params):
    b, t, k = x.shape
    n = b * t
    tm = _row_tile(n)

    x2d = x.astype(jnp.bfloat16).reshape(n, k)
    qkv2d = run_qkv(x2d, params["wqkv"], tm=tm)              # (n, 3k) bf16
    attn = run_attention(qkv2d.reshape(b, t, 3 * k), k)      # (b, t, k) bf16
    px = run_post(x2d, attn.reshape(n, k), params, tm=tm)    # (n, k) f32

    # drop the first token of every sequence (cheap final slice; the block
    # activations themselves never round-trip through HBM)
    return px.reshape(b, t, k)[:, 1:, :].reshape(-1, k)


# ----------------------------------------------------------------------------
# Parameters: PyTorch-style init in f32, then packed/cast for the kernels
# ----------------------------------------------------------------------------
def init_params(key, k):
    kf = 4 * k
    keys = jax.random.split(key, 13)

    def lin_w(kk, fan_in, fan_out):
        bound = 1.0 / (fan_in ** 0.5)
        return jax.random.uniform(kk, (fan_in, fan_out), jnp.float32, -bound, bound)

    def lin_b(kk, fan_in, fan_out):
        bound = 1.0 / (fan_in ** 0.5)
        return jax.random.uniform(kk, (1, fan_out), jnp.float32, -bound, bound)

    return {
        "wq": lin_w(keys[0], k, k), "wk": lin_w(keys[1], k, k),
        "wv": lin_w(keys[2], k, k),
        "wu": lin_w(keys[3], k, k), "bu": lin_b(keys[4], k, k),
        "ff_w1": lin_w(keys[5], k, kf), "ff_b1": lin_b(keys[6], k, kf),
        "ff_w2": lin_w(keys[7], kf, k), "ff_b2": lin_b(keys[8], kf, k),
        "px_w1": lin_w(keys[9], k, kf), "px_b1": lin_b(keys[10], k, kf),
        "px_w2": lin_w(keys[11], kf, k), "px_b2": lin_b(keys[12], kf, k),
    }


def prepare_params(raw, k):
    """Pack for the kernels: bf16 weights, f32 biases, qkv concat w/ folded scale."""
    s = 1.0 / (float(k) ** 0.25)
    bf = jnp.bfloat16
    wqkv = jnp.concatenate([raw["wq"] * s, raw["wk"] * s, raw["wv"]], axis=1)
    return {
        "wqkv": wqkv.astype(bf),
        "wu": raw["wu"].astype(bf), "bu": raw["bu"],
        "ff_w1": raw["ff_w1"].astype(bf), "ff_b1": raw["ff_b1"],
        "ff_w2": raw["ff_w2"].astype(bf), "ff_b2": raw["ff_b2"],
        "px_w1": raw["px_w1"].astype(bf), "px_b1": raw["px_b1"],
        "px_w2": raw["px_w2"].astype(bf), "px_b2": raw["px_b2"],
    }


# ----------------------------------------------------------------------------
# Pure-JAX f32 reference (mirrors the PyTorch module) for a sanity check
# ----------------------------------------------------------------------------
def vm_decoder_reference(x, raw):
    b, t, k = x.shape
    s = 1.0 / (k ** 0.25)
    q = (x @ raw["wq"]) * s
    kk = (x @ raw["wk"]) * s
    v = x @ raw["wv"]
    dot = jnp.einsum("btk,bsk->bts", q, kk)
    mask = jnp.triu(jnp.ones((t, t), dtype=bool), 1)
    dot = jnp.where(mask[None], -jnp.inf, dot)
    p = jax.nn.softmax(dot, axis=-1)
    attn = jnp.einsum("bts,bsk->btk", p, v)
    x1 = x + (attn @ raw["wu"] + raw["bu"])
    h = jnp.maximum(x1 @ raw["ff_w1"] + raw["ff_b1"], 0.0)
    x2 = x1 + (h @ raw["ff_w2"] + raw["ff_b2"])
    x2 = x2[:, 1:, :].reshape(-1, k)
    g = x2 @ raw["px_w1"] + raw["px_b1"]
    return g @ raw["px_w2"] + raw["px_b2"]


if __name__ == "__main__":
    # Small shapes consistent with the module (k scaled down from 4096 -> 128).
    B, T, K = 4, 8, 128

    root = jax.random.PRNGKey(0)
    kx, kp = jax.random.split(root)
    x = jax.random.normal(kx, (B, T, K), dtype=jnp.float32)
    raw = init_params(kp, K)
    params = prepare_params(raw, K)

    out = jax.block_until_ready(vm_decoder_forward(x, params))

    assert out.shape == (B * (T - 1), K), out.shape
    assert bool(jnp.all(jnp.isfinite(out)))

    # loose sanity check vs f32 reference (kernels run bf16 MXU / f32 accum)
    ref = vm_decoder_reference(x, raw)
    rel_err = float(jnp.max(jnp.abs(out - ref)) / (jnp.max(jnp.abs(ref)) + 1e-6))
    assert rel_err < 0.1, rel_err

    print("KERNEL_OK")
</pallas_src>

<mosaic_0001>
module attributes {stable_mosaic.version = 11 : i64} {
  func.func @qkv_kernel(%arg0: i32, %arg1: memref<16x128xbf16, #tpu.memory_space<vmem>>, %arg2: memref<128x384xbf16, #tpu.memory_space<vmem>>, %arg3: memref<16x384xbf16, #tpu.memory_space<vmem>>) attributes {dimension_semantics = [#tpu.dimension_semantics<parallel>], iteration_bounds = array<i64: 2>, scalar_prefetch = 0 : i64, scratch_operands = 0 : i64, tpu.core_type = #tpu.core_type<tc>, window_params = [{transform_indices = @transform_0, window_bounds = array<i64: 16, 128>}, {pipeline_mode = #tpu.pipeline_mode<synchronous>, transform_indices = @transform_1, window_bounds = array<i64: 128, 384>}, {transform_indices = @transform_2, window_bounds = array<i64: 16, 384>}]} {
    %c0 = arith.constant 0 : index
    %c0_0 = arith.constant 0 : index
    %0 = vector.load %arg1[%c0, %c0_0] : memref<16x128xbf16, #tpu.memory_space<vmem>>, vector<16x128xbf16>
    %c0_1 = arith.constant 0 : index
    %c0_2 = arith.constant 0 : index
    %1 = vector.load %arg2[%c0_1, %c0_2] : memref<128x384xbf16, #tpu.memory_space<vmem>>, vector<128x384xbf16>
    %cst = arith.constant dense<0.000000e+00> : vector<16x384xf32>
    %2 = tpu.matmul %0, %1, %cst {dimension_numbers = #tpu.dot_dimension_numbers<[1], [0], [0], [1], [0, 0, 1, 1], [], []>} : vector<16x128xbf16>, vector<128x384xbf16>, vector<16x384xf32> -> vector<16x384xf32>
    %3 = arith.truncf %2 : vector<16x384xf32> to vector<16x384xbf16>
    %c0_3 = arith.constant 0 : index
    %c0_4 = arith.constant 0 : index
    %4 = vector.load %arg3[%c0_3, %c0_4] : memref<16x384xbf16, #tpu.memory_space<vmem>>, vector<16x384xbf16>
    tpu.vector_store %arg3[%c0_3, %c0_4], %3 {strides = array<i32>} : memref<16x384xbf16, #tpu.memory_space<vmem>>, vector<16x384xbf16>,
    return
  }
  func.func @transform_0(%arg0: i32) -> (i32, i32) {
    %c0_i32 = arith.constant 0 : i32
    %c0_i32_0 = arith.constant 0 : i32
    return %arg0, %c0_i32 : i32, i32
  }
  func.func @transform_1(%arg0: i32) -> (i32, i32) {
    %c0_i32 = arith.constant 0 : i32
    %c0_i32_0 = arith.constant 0 : i32
    %c0_i32_1 = arith.constant 0 : i32
    return %c0_i32, %c0_i32_0 : i32, i32
  }
  func.func @transform_2(%arg0: i32) -> (i32, i32) {
    %c0_i32 = arith.constant 0 : i32
    %c0_i32_0 = arith.constant 0 : i32
    return %arg0, %c0_i32 : i32, i32
  }
}

module attributes {stable_mosaic.version = 11 : i64} {
  func.func @post_kernel(%arg0: i32, %arg1: memref<16x128xbf16, #tpu.memory_space<vmem>>, %arg2: memref<16x128xbf16, #tpu.memory_space<vmem>>, %arg3: memref<128x128xbf16, #tpu.memory_space<vmem>>, %arg4: memref<1x128xf32, #tpu.memory_space<vmem>>, %arg5: memref<128x512xbf16, #tpu.memory_space<vmem>>, %arg6: memref<1x512xf32, #tpu.memory_space<vmem>>, %arg7: memref<512x128xbf16, #tpu.memory_space<vmem>>, %arg8: memref<1x128xf32, #tpu.memory_space<vmem>>, %arg9: memref<128x512xbf16, #tpu.memory_space<vmem>>, %arg10: memref<1x512xf32, #tpu.memory_space<vmem>>, %arg11: memref<512x128xbf16, #tpu.memory_space<vmem>>, %arg12: memref<1x128xf32, #tpu.memory_space<vmem>>, %arg13: memref<16x128xf32, #tpu.memory_space<vmem>>) attributes {dimension_semantics = [#tpu.dimension_semantics<parallel>], iteration_bounds = array<i64: 2>, scalar_prefetch = 0 : i64, scratch_operands = 0 : i64, tpu.core_type = #tpu.core_type<tc>, window_params = [{transform_indices = @transform_0, window_bounds = array<i64: 16, 128>}, {transform_indices = @transform_1, window_bounds = array<i64: 16, 128>}, {pipeline_mode = #tpu.pipeline_mode<synchronous>, transform_indices = @transform_2, window_bounds = array<i64: 128, 128>}, {pipeline_mode = #tpu.pipeline_mode<synchronous>, transform_indices = @transform_3, window_bounds = array<i64: 1, 128>}, {pipeline_mode = #tpu.pipeline_mode<synchronous>, transform_indices = @transform_4, window_bounds = array<i64: 128, 512>}, {pipeline_mode = #tpu.pipeline_mode<synchronous>, transform_indices = @transform_5, window_bounds = array<i64: 1, 512>}, {pipeline_mode = #tpu.pipeline_mode<synchronous>, transform_indices = @transform_6, window_bounds = array<i64: 512, 128>}, {pipeline_mode = #tpu.pipeline_mode<synchronous>, transform_indices = @transform_7, window_bounds = array<i64: 1, 128>}, {pipeline_mode = #tpu.pipeline_mode<synchronous>, transform_indices = @transform_8, window_bounds = array<i64: 128, 512>}, {pipeline_mode = #tpu.pipeline_mode<synchronous>, transform_indices = @transform_9, window_bounds = array<i64: 1, 512>}, {pipeline_mode = #tpu.pipeline_mode<synchronous>, transform_indices = @transform_10, window_bounds = array<i64: 512, 128>}, {pipeline_mode = #tpu.pipeline_mode<synchronous>, transform_indices = @transform_11, window_bounds = array<i64: 1, 128>}, {transform_indices = @transform_12, window_bounds = array<i64: 16, 128>}]} {
    %c0 = arith.constant 0 : index
    %c0_0 = arith.constant 0 : index
    %0 = vector.load %arg1[%c0, %c0_0] : memref<16x128xbf16, #tpu.memory_space<vmem>>, vector<16x128xbf16>
    %c0_1 = arith.constant 0 : index
    %c0_2 = arith.constant 0 : index
    %1 = vector.load %arg2[%c0_1, %c0_2] : memref<16x128xbf16, #tpu.memory_space<vmem>>, vector<16x128xbf16>
    %c0_3 = arith.constant 0 : index
    %c0_4 = arith.constant 0 : index
    %2 = vector.load %arg3[%c0_3, %c0_4] : memref<128x128xbf16, #tpu.memory_space<vmem>>, vector<128x128xbf16>
    %cst = arith.constant dense<0.000000e+00> : vector<16x128xf32>
    %3 = tpu.matmul %1, %2, %cst {dimension_numbers = #tpu.dot_dimension_numbers<[1], [0], [0], [1], [0, 0, 1, 1], [], []>} : vector<16x128xbf16>, vector<128x128xbf16>, vector<16x128xf32> -> vector<16x128xf32>
    %c0_5 = arith.constant 0 : index
    %c0_6 = arith.constant 0 : index
    %4 = vector.load %arg4[%c0_5, %c0_6] : memref<1x128xf32, #tpu.memory_space<vmem>>, vector<1x128xf32>
    %5 = vector.broadcast %4 : vector<1x128xf32> to vector<16x128xf32>
    %6 = arith.addf %3, %5 : vector<16x128xf32>
    %7 = arith.extf %0 : vector<16x128xbf16> to vector<16x128xf32>
    %8 = arith.addf %7, %6 : vector<16x128xf32>
    %9 = arith.truncf %8 : vector<16x128xf32> to vector<16x128xbf16>
    %c0_7 = arith.constant 0 : index
    %c0_8 = arith.constant 0 : index
    %10 = vector.load %arg5[%c0_7, %c0_8] : memref<128x512xbf16, #tpu.memory_space<vmem>>, vector<128x512xbf16>
    %cst_9 = arith.constant dense<0.000000e+00> : vector<16x512xf32>
    %11 = tpu.matmul %9, %10, %cst_9 {dimension_numbers = #tpu.dot_dimension_numbers<[1], [0], [0], [1], [0, 0, 1, 1], [], []>} : vector<16x128xbf16>, vector<128x512xbf16>, vector<16x512xf32> -> vector<16x512xf32>
    %c0_10 = arith.constant 0 : index
    %c0_11 = arith.constant 0 : index
    %12 = vector.load %arg6[%c0_10, %c0_11] : memref<1x512xf32, #tpu.memory_space<vmem>>, vector<1x512xf32>
    %13 = vector.broadcast %12 : vector<1x512xf32> to vector<16x512xf32>
    %14 = arith.addf %11, %13 : vector<16x512xf32>
    %cst_12 = arith.constant 0.000000e+00 : f32
    %15 = vector.broadcast %cst_12 : f32 to vector<16x512xf32>
    %16 = arith.maximumf %14, %15 : vector<16x512xf32>
    %17 = arith.truncf %16 : vector<16x512xf32> to vector<16x512xbf16>
    %c0_13 = arith.constant 0 : index
    %c0_14 = arith.constant 0 : index
    %18 = vector.load %arg7[%c0_13, %c0_14] : memref<512x128xbf16, #tpu.memory_space<vmem>>, vector<512x128xbf16>
    %cst_15 = arith.constant dense<0.000000e+00> : vector<16x128xf32>
    %19 = tpu.matmul %17, %18, %cst_15 {dimension_numbers = #tpu.dot_dimension_numbers<[1], [0], [0], [1], [0, 0, 1, 1], [], []>} : vector<16x512xbf16>, vector<512x128xbf16>, vector<16x128xf32> -> vector<16x128xf32>
    %20 = arith.addf %8, %19 : vector<16x128xf32>
    %c0_16 = arith.constant 0 : index
    %c0_17 = arith.constant 0 : index
    %21 = vector.load %arg8[%c0_16, %c0_17] : memref<1x128xf32, #tpu.memory_space<vmem>>, vector<1x128xf32>
    %22 = vector.broadcast %21 : vector<1x128xf32> to vector<16x128xf32>
    %23 = arith.addf %20, %22 : vector<16x128xf32>
    %24 = arith.truncf %23 : vector<16x128xf32> to vector<16x128xbf16>
    %c0_18 = arith.constant 0 : index
    %c0_19 = arith.constant 0 : index
    %25 = vector.load %arg9[%c0_18, %c0_19] : memref<128x512xbf16, #tpu.memory_space<vmem>>, vector<128x512xbf16>
    %cst_20 = arith.constant dense<0.000000e+00> : vector<16x512xf32>
    %26 = tpu.matmul %24, %25, %cst_20 {dimension_numbers = #tpu.dot_dimension_numbers<[1], [0], [0], [1], [0, 0, 1, 1], [], []>} : vector<16x128xbf16>, vector<128x512xbf16>, vector<16x512xf32> -> vector<16x512xf32>
    %c0_21 = arith.constant 0 : index
    %c0_22 = arith.constant 0 : index
    %27 = vector.load %arg10[%c0_21, %c0_22] : memref<1x512xf32, #tpu.memory_space<vmem>>, vector<1x512xf32>
    %28 = vector.broadcast %27 : vector<1x512xf32> to vector<16x512xf32>
    %29 = arith.addf %26, %28 : vector<16x512xf32>
    %30 = arith.truncf %29 : vector<16x512xf32> to vector<16x512xbf16>
    %c0_23 = arith.constant 0 : index
    %c0_24 = arith.constant 0 : index
    %31 = vector.load %arg11[%c0_23, %c0_24] : memref<512x128xbf16, #tpu.memory_space<vmem>>, vector<512x128xbf16>
    %cst_25 = arith.constant dense<0.000000e+00> : vector<16x128xf32>
    %32 = tpu.matmul %30, %31, %cst_25 {dimension_numbers = #tpu.dot_dimension_numbers<[1], [0], [0], [1], [0, 0, 1, 1], [], []>} : vector<16x512xbf16>, vector<512x128xbf16>, vector<16x128xf32> -> vector<16x128xf32>
    %c0_26 = arith.constant 0 : index
    %c0_27 = arith.constant 0 : index
    %33 = vector.load %arg12[%c0_26, %c0_27] : memref<1x128xf32, #tpu.memory_space<vmem>>, vector<1x128xf32>
    %34 = vector.broadcast %33 : vector<1x128xf32> to vector<16x128xf32>
    %35 = arith.addf %32, %34 : vector<16x128xf32>
    %c0_28 = arith.constant 0 : index
    %c0_29 = arith.constant 0 : index
    %36 = vector.load %arg13[%c0_28, %c0_29] : memref<16x128xf32, #tpu.memory_space<vmem>>, vector<16x128xf32>
    tpu.vector_store %arg13[%c0_28, %c0_29], %35 {strides = array<i32>} : memref<16x128xf32, #tpu.memory_space<vmem>>, vector<16x128xf32>,
    return
  }
  func.func @transform_0(%arg0: i32) -> (i32, i32) {
    %c0_i32 = arith.constant 0 : i32
    %c0_i32_0 = arith.constant 0 : i32
    return %arg0, %c0_i32 : i32, i32
  }
  func.func @transform_1(%arg0: i32) -> (i32, i32) {
    %c0_i32 = arith.constant 0 : i32
    %c0_i32_0 = arith.constant 0 : i32
    return %arg0, %c0_i32 : i32, i32
  }
  func.func @transform_2(%arg0: i32) -> (i32, i32) {
    %c0_i32 = arith.constant 0 : i32
    %c0_i32_0 = arith.constant 0 : i32
    %c0_i32_1 = arith.constant 0 : i32
    return %c0_i32, %c0_i32_0 : i32, i32
  }
  func.func @transform_3(%arg0: i32) -> (i32, i32) {
    %c0_i32 = arith.constant 0 : i32
    %c0_i32_0 = arith.constant 0 : i32
    %c0_i32_1 = arith.constant 0 : i32
    return %c0_i32, %c0_i32_0 : i32, i32
  }
  func.func @transform_4(%arg0: i32) -> (i32, i32) {
    %c0_i32 = arith.constant 0 : i32
    %c0_i32_0 = arith.constant 0 : i32
    %c0_i32_1 = arith.constant 0 : i32
    return %c0_i32, %c0_i32_0 : i32, i32
  }
  func.func @transform_5(%arg0: i32) -> (i32, i32) {
    %c0_i32 = arith.constant 0 : i32
    %c0_i32_0 = arith.constant 0 : i32
    %c0_i32_1 = arith.constant 0 : i32
    return %c0_i32, %c0_i32_0 : i32, i32
  }
  func.func @transform_6(%arg0: i32) -> (i32, i32) {
    %c0_i32 = arith.constant 0 : i32
    %c0_i32_0 = arith.constant 0 : i32
    %c0_i32_1 = arith.constant 0 : i32
    return %c0_i32, %c0_i32_0 : i32, i32
  }
  func.func @transform_7(%arg0: i32) -> (i32, i32) {
    %c0_i32 = arith.constant 0 : i32
    %c0_i32_0 = arith.constant 0 : i32
    %c0_i32_1 = arith.constant 0 : i32
    return %c0_i32, %c0_i32_0 : i32, i32
  }
  func.func @transform_8(%arg0: i32) -> (i32, i32) {
    %c0_i32 = arith.constant 0 : i32
    %c0_i32_0 = arith.constant 0 : i32
    %c0_i32_1 = arith.constant 0 : i32
    return %c0_i32, %c0_i32_0 : i32, i32
  }
  func.func @transform_9(%arg0: i32) -> (i32, i32) {
    %c0_i32 = arith.constant 0 : i32
    %c0_i32_0 = arith.constant 0 : i32
    %c0_i32_1 = arith.constant 0 : i32
    return %c0_i32, %c0_i32_0 : i32, i32
  }
  func.func @transform_10(%arg0: i32) -> (i32, i32) {
    %c0_i32 = arith.constant 0 : i32
    %c0_i32_0 = arith.constant 0 : i32
    %c0_i32_1 = arith.constant 0 : i32
    return %c0_i32, %c0_i32_0 : i32, i32
  }
  func.func @transform_11(%arg0: i32) -> (i32, i32) {
    %c0_i32 = arith.constant 0 : i32
    %c0_i32_0 = arith.constant 0 : i32
    %c0_i32_1 = arith.constant 0 : i32
    return %c0_i32, %c0_i32_0 : i32, i32
  }
  func.func @transform_12(%arg0: i32) -> (i32, i32) {
    %c0_i32 = arith.constant 0 : i32
    %c0_i32_0 = arith.constant 0 : i32
    return %arg0, %c0_i32 : i32, i32
  }
}

module attributes {stable_mosaic.version = 11 : i64} {
  func.func @attention_kernel(%arg0: i32, %arg1: memref<1x8x384xbf16, #tpu.memory_space<vmem>>, %arg2: memref<1x8x128xbf16, #tpu.memory_space<vmem>>) attributes {dimension_semantics = [#tpu.dimension_semantics<parallel>], iteration_bounds = array<i64: 4>, scalar_prefetch = 0 : i64, scratch_operands = 0 : i64, tpu.core_type = #tpu.core_type<tc>, window_params = [{transform_indices = @transform_0, window_bounds = array<i64: 1, 8, 384>}, {transform_indices = @transform_1, window_bounds = array<i64: 1, 8, 128>}]} {
    %c0 = arith.constant 0 : index
    %c0_0 = arith.constant 0 : index
    %c0_1 = arith.constant 0 : index
    %0 = vector.load %arg1[%c0, %c0_0, %c0_1] : memref<1x8x384xbf16, #tpu.memory_space<vmem>>, vector<1x8x384xbf16>
    %1 = vector.shape_cast %0 : vector<1x8x384xbf16> to vector<8x384xbf16>
    %2 = vector.extract_strided_slice %1 {offsets = [0, 0], sizes = [8, 128], strides = [1, 1]} : vector<8x384xbf16> to vector<8x128xbf16>
    %3 = vector.extract_strided_slice %1 {offsets = [0, 128], sizes = [8, 128], strides = [1, 1]} : vector<8x384xbf16> to vector<8x128xbf16>
    %4 = vector.extract_strided_slice %1 {offsets = [0, 256], sizes = [8, 128], strides = [1, 1]} : vector<8x384xbf16> to vector<8x128xbf16>
    %cst = arith.constant dense<0.000000e+00> : vector<8x8xf32>
    %5 = tpu.matmul %2, %3, %cst {dimension_numbers = #tpu.dot_dimension_numbers<[1], [1], [0], [0], [0, 0, 1, 0], [], []>} : vector<8x128xbf16>, vector<8x128xbf16>, vector<8x8xf32> -> vector<8x8xf32>
    %6 = tpu.iota {dimensions = array<i32: 0>} : vector<8x8xi32>
    %7 = tpu.iota {dimensions = array<i32: 1>} : vector<8x8xi32>
    %8 = arith.cmpi sgt, %7, %6 : vector<8x8xi32>
    %cst_2 = arith.constant 0xFF800000 : f32
    %9 = vector.broadcast %cst_2 : f32 to vector<8x8xf32>
    %10 = arith.select %8, %9, %5 : vector<8x8xi1>, vector<8x8xf32>
    %cst_3 = arith.constant dense<0xFF800000> : vector<8xf32>
    %11 = vector.multi_reduction <maximumf>, %10, %cst_3 [1] : vector<8x8xf32> to vector<8xf32>
    %12 = vector.shape_cast %11 : vector<8xf32> to vector<8x1xf32>
    %13 = vector.broadcast %12 : vector<8x1xf32> to vector<8x8xf32>
    %14 = arith.subf %10, %13 : vector<8x8xf32>
    %15 = math.exp %14 : vector<8x8xf32>
    %cst_4 = arith.constant dense<0.000000e+00> : vector<8xf32>
    %16 = vector.multi_reduction <add>, %15, %cst_4 [1] : vector<8x8xf32> to vector<8xf32>
    %17 = vector.shape_cast %16 : vector<8xf32> to vector<8x1xf32>
    %18 = tpu.reciprocal %17 {approx = true} : vector<8x1xf32> -> vector<8x1xf32>
    %19 = vector.broadcast %18 : vector<8x1xf32> to vector<8x8xf32>
    %20 = arith.mulf %15, %19 : vector<8x8xf32>
    %21 = arith.truncf %20 : vector<8x8xf32> to vector<8x8xbf16>
    %cst_5 = arith.constant dense<0.000000e+00> : vector<8x128xf32>
    %22 = tpu.matmul %21, %4, %cst_5 {dimension_numbers = #tpu.dot_dimension_numbers<[1], [0], [0], [1], [0, 0, 1, 1], [], []>} : vector<8x8xbf16>, vector<8x128xbf16>, vector<8x128xf32> -> vector<8x128xf32>
    %23 = arith.truncf %22 : vector<8x128xf32> to vector<8x128xbf16>
    %c0_6 = arith.constant 0 : index
    %c0_7 = arith.constant 0 : index
    %c0_8 = arith.constant 0 : index
    %24 = vector.load %arg2[%c0_6, %c0_7, %c0_8] : memref<1x8x128xbf16, #tpu.memory_space<vmem>>, vector<1x8x128xbf16>
    %25 = vector.shape_cast %24 : vector<1x8x128xbf16> to vector<8x128xbf16>
    %26 = vector.shape_cast %23 : vector<8x128xbf16> to vector<1x8x128xbf16>
    tpu.vector_store %arg2[%c0_6, %c0_7, %c0_8], %26 {strides = array<i32>} : memref<1x8x128xbf16, #tpu.memory_space<vmem>>, vector<1x8x128xbf16>,
    return
  }
  func.func @transform_0(%arg0: i32) -> (i32, i32, i32) {
    %c0_i32 = arith.constant 0 : i32
    %c0_i32_0 = arith.constant 0 : i32
    %c0_i32_1 = arith.constant 0 : i32
    return %arg0, %c0_i32, %c0_i32_0 : i32, i32, i32
  }
  func.func @transform_1(%arg0: i32) -> (i32, i32, i32) {
    %c0_i32 = arith.constant 0 : i32
    %c0_i32_0 = arith.constant 0 : i32
    %c0_i32_1 = arith.constant 0 : i32
    return %arg0, %c0_i32, %c0_i32_0 : i32, i32, i32
  }
}

</mosaic_0001>

<llo_original>
// kernel: vm_decoder_forward.3
$region0: #{vm_decoder_forward.3}
  #allocation0 [shape = 'u32[]', space=smem, size = 0x4, offset = 0x4, fixed_abs, tag = 'smem constant byte address 0x4 - core index']
  #allocation1 [shape = 'u32[144,128]{1,0:T(1,128)}', space=vmem, size = 0x12000, scoped, tag = 'internal scratch']
  %s0 = inlined_call_operand.vmem [shape: bf16[32,128], index: 0, kind: input, shape index: {}]
  %s1 = inlined_call_operand.hbm [shape: bf16[128,384], index: 1, kind: input, shape index: {}]
  %s2 = inlined_call_operand.vmem [shape: bf16[32,384], index: 2, kind: output, shape index: {}]
  %s3 = sld [smem:[#allocation0]]
  $region45: #{vm_decoder_forward.3} parent=0
    _
  %s5 = ssub.s32 1, %s3
  %s6 = scalar_select 0, %s5, %s3
  $region1: #{vm_decoder_forward.3} parent=0
    #allocation2 [shape = 'u8[98304]{0}', space=vmem, size = 0x18000, scoped, tag = 'input window, operand 1, single buffered']
    #allocation3 [shape = 's32[2]{0}', space=sflag, size = 0x8, scoped, tag = 'scoped memory for vm_decoder_forward.3']
    %7 = vsyncpa [#allocation3], 0
    loop: start=0, step=1, limit=4
    $region2: #{vm_decoder_forward.3} parent=1 // loop_pre_header
      _
    $region3: #{vm_decoder_forward.3} parent=1 // loop_header
      %s9 = sphi 0, %s13
      %p10 = scmp.ge.s32.totalorder %s9, 4
      %s19 = sphi 0, %s21
      %s22 = sphi 0, %s19
      %s23 = sphi 0, %s22
      %s39 = sphi 0, %s23
      %s43 = sphi 0, %s43
      %s45 = sphi 0, %s43
      %s46 = sphi 0, %s45
      %s60 = sphi 0, %s46
      %s66 = sphi 0, %s68
      %s69 = sphi 0, %s66
      %s70 = sphi 0, %s69
      %s86 = sphi 0, %s70
    $region4: #{vm_decoder_forward.3} parent=1 // loop_header_branch
      %12 = sbr.rel (%p10) target = $region8
    $region5: #{vm_decoder_forward.3} parent=1 // loop_body
      %s14 = ssub.s32 %s9, 1
      %s15 = ssub.s32 %s9, 2
      %s16 = sadd.s32 %s9, 1
      %s17 = ssub.s32 %s9, %s16
      %p18 = scmp.eq.s32.totalorder %s17, 0
      %s20 = sadd.s32 %s19, 1
      %s21 = scalar_select %p18, %s19, %s20
      %p24 = pneg %p18
      %p25 = scmp.eq.s32.totalorder %s9, 1
      %p26 = por %p24, %p25
      %p27 = scmp.ne.s32.totalorder %s19, %s22
      %p28 = scmp.eq.s32.totalorder %s9, 0
      %p29 = por %p27, %p28
      %p30 = scmp.ne.s32.totalorder %s19, %s22
      %p31 = scmp.eq.s32.totalorder %s14, 1
      %p32 = por %p30, %p31
      %p33 = scmp.ne.s32.totalorder %s22, %s23
      %p34 = scmp.eq.s32.totalorder %s14, 0
      %p35 = por %p33, %p34
      %p36 = scmp.ne.s32.totalorder %s22, %s23
      %p37 = scmp.eq.s32.totalorder %s15, 1
      %p38 = por %p36, %p37
      %p40 = scmp.ne.s32.totalorder %s23, %s39
      %p41 = scmp.eq.s32.totalorder %s15, 0
      %p42 = por %p40, %p41
      %s44 = sadd.s32 %s43, 1
      %p47 = scmp.eq.s32.totalorder %s9, 1
      %p48 = scmp.ne.s32.totalorder %s43, %s45
      %p49 = scmp.eq.s32.totalorder %s9, 0
      %p50 = por %p48, %p49
      %p51 = scmp.ne.s32.totalorder %s43, %s45
      %p52 = scmp.eq.s32.totalorder %s14, 1
      %p53 = por %p51, %p52
      %p54 = scmp.ne.s32.totalorder %s45, %s46
      %p55 = scmp.eq.s32.totalorder %s14, 0
      %p56 = por %p54, %p55
      %p57 = scmp.ne.s32.totalorder %s45, %s46
      %p58 = scmp.eq.s32.totalorder %s15, 1
      %p59 = por %p57, %p58
      %p61 = scmp.ne.s32.totalorder %s46, %s60
      %p62 = scmp.eq.s32.totalorder %s15, 0
      %p63 = por %p61, %p62
      %s64 = ssub.s32 %s9, %s16
      %p65 = scmp.eq.s32.totalorder %s64, 0
      %s67 = sadd.s32 %s66, 1
      %s68 = scalar_select %p65, %s66, %s67
      %p71 = pneg %p65
      %p72 = scmp.eq.s32.totalorder %s9, 1
      %p73 = por %p71, %p72
      %p74 = scmp.ne.s32.totalorder %s66, %s69
      %p75 = scmp.eq.s32.totalorder %s9, 0
      %p76 = por %p74, %p75
      %p77 = scmp.ne.s32.totalorder %s66, %s69
      %p78 = scmp.eq.s32.totalorder %s14, 1
      %p79 = por %p77, %p78
      %p80 = scmp.ne.s32.totalorder %s69, %s70
      %p81 = scmp.eq.s32.totalorder %s14, 0
      %p82 = por %p80, %p81
      %p83 = scmp.ne.s32.totalorder %s69, %s70
      %p84 = scmp.eq.s32.totalorder %s15, 1
      %p85 = por %p83, %p84
      %p87 = scmp.ne.s32.totalorder %s70, %s86
      %p88 = scmp.eq.s32.totalorder %s15, 0
      %p89 = por %p87, %p88
      %p90 = scmp.le.s32.totalorder 1, %s9
      %p91 = scmp.lt.s32.totalorder %s9, 3
      %p92 = pnand %p90, %p91
      %p93 = pneg %p92
      // Predicated region
      $region9: #{vm_decoder_forward.3} parent=5 // pred_check
        _
      $region10: #{vm_decoder_forward.3} parent=5 // pred_check_branch
        %95 = sbr.rel (%p92) target = $region12
      $region11: #{vm_decoder_forward.3} parent=5 // pred_region
        %s96 = ssub.s32 %s9, 1
        // Predicated region
        $region13: #{vm_decoder_forward.3} parent=11 // pred_check
          %p97 = pneg %p56
        $region14: #{vm_decoder_forward.3} parent=11 // pred_check_branch
          %99 = sbr.rel (%p97) target = $region16
        $region15: #{vm_decoder_forward.3} parent=11 // pred_region
          %s101 = ssub.s32 3072, 3072
          %102 = vsyncadd [#allocation3], %s101
          %s103 = sshll.u32 [#allocation2], 4
          %s104 = int_to_ptr.vmem [resolvable:$true] %s103
          %109 = dma.hbm_to_vmem [thread:$0]  %s1, 3072, %s104, [#allocation3], 192, 192, 12
        $region16: #{vm_decoder_forward.3} parent=11 // pred_fallthru
          _
      $region12: #{vm_decoder_forward.3} parent=5 // pred_fallthru
        _
      %p110 = scmp.lt.s32.totalorder %s9, 2
      // Predicated region
      $region17: #{vm_decoder_forward.3} parent=5 // pred_check
        %p111 = pneg %p110
      $region18: #{vm_decoder_forward.3} parent=5 // pred_check_branch
        %113 = sbr.rel (%p111) target = $region20
      $region19: #{vm_decoder_forward.3} parent=5 // pred_region
        // Predicated region
        $region21: #{vm_decoder_forward.3} parent=19 // pred_check
          %p114 = pneg %p29
        $region22: #{vm_decoder_forward.3} parent=19 // pred_check_branch
          %116 = sbr.rel (%p114) target = $region24
        $region23: #{vm_decoder_forward.3} parent=19 // pred_region
          %s117 = smul.u32 2, %s9
          %p118 = scmp.lt.s32.totalorder %s117, 3
          %s119 = scalar_select %p118, %s117, 3
          %s120 = smul.addr %s119, 4
          %s121 = scalar_lea.vmem %s0, %s120
          %s122 = smul.u32 2, %s9
        $region24: #{vm_decoder_forward.3} parent=19 // pred_fallthru
          _
      $region20: #{vm_decoder_forward.3} parent=5 // pred_fallthru
        _
      %p123 = scmp.le.s32.totalorder 1, %s9
      %p124 = scmp.lt.s32.totalorder %s9, 3
      %p125 = pnand %p123, %p124
      %p126 = pneg %p125
      // Predicated region
      $region25: #{vm_decoder_forward.3} parent=5 // pred_check
        _
      $region26: #{vm_decoder_forward.3} parent=5 // pred_check_branch
        %128 = sbr.rel (%p125) target = $region28
      $region27: #{vm_decoder_forward.3} parent=5 // pred_region
        %s129 = ssub.s32 %s9, 1
        // Predicated region
        $region29: #{vm_decoder_forward.3} parent=27 // pred_check
          %p130 = pneg %p56
        $region30: #{vm_decoder_forward.3} parent=27 // pred_check_branch
          %132 = sbr.rel (%p130) target = $region32
        $region31: #{vm_decoder_forward.3} parent=27 // pred_region
          %133 = dma.done [#allocation3], 3072
        $region32: #{vm_decoder_forward.3} parent=27 // pred_fallthru
          _
        %s134 = smul.u32 2, %s14
        %p135 = scmp.lt.s32.totalorder %s134, 3
        %s136 = scalar_select %p135, %s134, 3
        %s137 = smul.addr %s136, 4
        %s138 = scalar_lea.vmem %s0, %s137
        %p139 = pneg %p35
        %p140 = pneg %p32
        %p141 = pneg %p56
        %p142 = pneg %p53
        %p143 = pneg %p82
        %p144 = pneg %p79
        %s145 = smul.u32 2, %s14
        %p146 = scmp.lt.s32.totalorder %s145, 3
        %s147 = scalar_select %p146, %s145, 3
        %s148 = smul.addr %s147, 3
        %s149 = smul.addr %s148, 4
        %s150 = scalar_lea.vmem %s2, %s149
        %s151 = smul.u32 2, %s14
        %p152 = scmp.lt.s32.totalorder %s151, 3
        %s153 = scalar_select %p152, %s151, 3
        %s154 = smul.addr %s153, 4
        %s155 = scalar_lea.vmem %s0, %s154
        %s156 = smul.u32 2, %s14
        %s157 = smul.u32 2, %s14
        %p158 = scmp.lt.s32.totalorder %s157, 3
        %s159 = scalar_select %p158, %s157, 3
        %s160 = smul.addr %s159, 3
        %s161 = smul.addr %s160, 4
        %s162 = scalar_lea.vmem %s2, %s161
        %s163 = smul.u32 2, %s14
        %v165 = vld [vmem:[%s155] sm:$0xf]
        %v166 = vld [vmem:[%s155 + $0x4] sm:$0xf]
        %v167 = vld [vmem:[#allocation2] sm:$0xff]
        %v168 = vld [vmem:[#allocation2 + $0x8] sm:$0xf]
        %v169 = vld [vmem:[#allocation2 + $0xc] sm:$0xff]
        %v170 = vld [vmem:[#allocation2 + $0x14] sm:$0xf]
        %v171 = vld [vmem:[#allocation2 + $0x18] sm:$0xff]
        %v172 = vld [vmem:[#allocation2 + $0x20] sm:$0xf]
        %v173 = vld [vmem:[#allocation2 + $0x24] sm:$0xff]
        %v174 = vld [vmem:[#allocation2 + $0x2c] sm:$0xf]
        %v175 = vld [vmem:[#allocation2 + $0x30] sm:$0xff]
        %v176 = vld [vmem:[#allocation2 + $0x38] sm:$0xf]
        %v177 = vld [vmem:[#allocation2 + $0x3c] sm:$0xff]
        %v178 = vld [vmem:[#allocation2 + $0x44] sm:$0xf]
        %v179 = vld [vmem:[#allocation2 + $0x48] sm:$0xff]
        %v180 = vld [vmem:[#allocation2 + $0x50] sm:$0xf]
        %v181 = vld [vmem:[#allocation2 + $0x54] sm:$0xff]
        %v182 = vld [vmem:[#allocation2 + $0x5c] sm:$0xf]
        %v183 = vld [vmem:[#allocation2 + $0x60] sm:$0xff]
        %v184 = vld [vmem:[#allocation2 + $0x68] sm:$0xf]
        %v185 = vld [vmem:[#allocation2 + $0x6c] sm:$0xff]
        %v186 = vld [vmem:[#allocation2 + $0x74] sm:$0xf]
        %v187 = vld [vmem:[#allocation2 + $0x78] sm:$0xff]
        %v188 = vld [vmem:[#allocation2 + $0x80] sm:$0xf]
        %v189 = vld [vmem:[#allocation2 + $0x84] sm:$0xff]
        %v190 = vld [vmem:[#allocation2 + $0x8c] sm:$0xf]
        %v191 = vld [vmem:[#allocation2 + $0x90] sm:$0xff]
        %v192 = vld [vmem:[#allocation2 + $0x98] sm:$0xf]
        %v193 = vld [vmem:[#allocation2 + $0x9c] sm:$0xff]
        %v194 = vld [vmem:[#allocation2 + $0xa4] sm:$0xf]
        %v195 = vld [vmem:[#allocation2 + $0xa8] sm:$0xff]
        %v196 = vld [vmem:[#allocation2 + $0xb0] sm:$0xf]
        %v197 = vld [vmem:[#allocation2 + $0xb4] sm:$0xff]
        %v198 = vld [vmem:[#allocation2 + $0xbc] sm:$0xf]
        %v201 = vunpack.c.l.b16 %v165
        %v202 = vunpack.c.l.b16 %v166
        %v203 = vpack.c.b16 %v202, %v201
        %v237 = vunpack.c.l.b16 %v167
        %v238 = vunpack.c.h.b16 %v167
        %v239 = vunpack.c.l.b16 %v168
        %v240 = vunpack.c.l.b16 %v169
        %v241 = vunpack.c.h.b16 %v169
        %v242 = vunpack.c.l.b16 %v170
        %v243 = vunpack.c.l.b16 %v171
        %v244 = vunpack.c.h.b16 %v171
        %v245 = vunpack.c.l.b16 %v172
        %v246 = vunpack.c.l.b16 %v173
        %v247 = vunpack.c.h.b16 %v173
        %v248 = vunpack.c.l.b16 %v174
        %v249 = vunpack.c.l.b16 %v175
        %v250 = vunpack.c.h.b16 %v175
        %v251 = vunpack.c.l.b16 %v176
        %v252 = vunpack.c.l.b16 %v177
        %v253 = vunpack.c.h.b16 %v177
        %v254 = vunpack.c.l.b16 %v178
        %v255 = vunpack.c.l.b16 %v179
        %v256 = vunpack.c.h.b16 %v179
        %v257 = vunpack.c.l.b16 %v180
        %v258 = vunpack.c.l.b16 %v181
        %v259 = vunpack.c.h.b16 %v181
        %v260 = vunpack.c.l.b16 %v182
        %v261 = vunpack.c.l.b16 %v183
        %v262 = vunpack.c.h.b16 %v183
        %v263 = vunpack.c.l.b16 %v184
        %v264 = vunpack.c.l.b16 %v185
        %v265 = vunpack.c.h.b16 %v185
        %v266 = vunpack.c.l.b16 %v186
        %v267 = vunpack.c.l.b16 %v187
        %v268 = vunpack.c.h.b16 %v187
        %v269 = vunpack.c.l.b16 %v188
        %v270 = vunpack.c.l.b16 %v189
        %v271 = vunpack.c.h.b16 %v189
        %v272 = vunpack.c.l.b16 %v190
        %v273 = vunpack.c.l.b16 %v191
        %v274 = vunpack.c.h.b16 %v191
        %v275 = vunpack.c.l.b16 %v192
        %v276 = vunpack.c.l.b16 %v193
        %v277 = vunpack.c.h.b16 %v193
        %v278 = vunpack.c.l.b16 %v194
        %v279 = vunpack.c.l.b16 %v195
        %v280 = vunpack.c.h.b16 %v195
        %v281 = vunpack.c.l.b16 %v196
        %v282 = vunpack.c.l.b16 %v197
        %v283 = vunpack.c.h.b16 %v197
        %v284 = vunpack.c.l.b16 %v198
        %v285 = vpack.c.b16 %v240, %v237
        %v286 = vpack.c.b16 %v241, %v238
        %v287 = vpack.c.b16 %v242, %v239
        %v288 = vpack.c.b16 %v246, %v243
        %v289 = vpack.c.b16 %v247, %v244
        %v290 = vpack.c.b16 %v248, %v245
        %v291 = vpack.c.b16 %v252, %v249
        %v292 = vpack.c.b16 %v253, %v250
        %v293 = vpack.c.b16 %v254, %v251
        %v294 = vpack.c.b16 %v258, %v255
        %v295 = vpack.c.b16 %v259, %v256
        %v296 = vpack.c.b16 %v260, %v257
        %v297 = vpack.c.b16 %v264, %v261
        %v298 = vpack.c.b16 %v265, %v262
        %v299 = vpack.c.b16 %v266, %v263
        %v300 = vpack.c.b16 %v270, %v267
        %v301 = vpack.c.b16 %v271, %v268
        %v302 = vpack.c.b16 %v272, %v269
        %v303 = vpack.c.b16 %v276, %v273
        %v304 = vpack.c.b16 %v277, %v274
        %v305 = vpack.c.b16 %v278, %v275
        %v306 = vpack.c.b16 %v282, %v279
        %v307 = vpack.c.b16 %v283, %v280
        %v308 = vpack.c.b16 %v284, %v281
        %333 = vmatprep.subr.bf16.mxu0 %v307
        %334 = vmatpush1.bf16.msra.mxu0 %v306
        %335 = vmatprep.subr.bf16.mxu0 %v304
        %336 = vmatpush1.bf16.msra.mxu0 %v303
        %337 = vmatprep.subr.bf16.mxu0 %v301
        %338 = vmatpush1.bf16.msra.mxu0 %v300
        %339 = vmatprep.subr.bf16.mxu0 %v298
        %340 = vmatpush1.bf16.msra.mxu0 %v297
        %341 = vmatprep.subr.bf16.mxu0 %v295
        %342 = vmatpush1.bf16.msra.mxu0 %v294
        %343 = vmatprep.subr.bf16.mxu0 %v292
        %344 = vmatpush1.bf16.msra.mxu0 %v291
        %345 = vmatprep.subr.bf16.mxu0 %v289
        %346 = vmatpush1.bf16.msra.mxu0 %v288
        %347 = vmatprep.subr.bf16.mxu0 %v286
        %348 = vmatpush1.bf16.msra.mxu0 %v285
        %349 = vmatprep.subr.bf16.mxu0 0
        %350 = vmatpush2.bf16.msra.mxu0 0
        %351 = vmatprep.subr.bf16.mxu0 0
        %352 = vmatpush2.bf16.msra.mxu0 0
        %353 = vmatprep.subr.bf16.mxu0 0
        %354 = vmatpush2.bf16.msra.mxu0 0
        %355 = vmatprep.subr.bf16.mxu0 0
        %356 = vmatpush2.bf16.msra.mxu0 0
        %357 = vmatprep.subr.bf16.mxu0 0
        %358 = vmatpush2.bf16.msra.mxu0 0
        %359 = vmatprep.subr.bf16.mxu0 0
        %360 = vmatpush2.bf16.msra.mxu0 0
        %361 = vmatprep.subr.bf16.mxu0 0
        %362 = vmatpush2.bf16.msra.mxu0 0
        %363 = vmatprep.subr.bf16.mxu0 0
        %364 = vmatpush2.bf16.msra.mxu0 0
        %365 = vmatprep.mubr.bf16.mxu0 0
        %366 = vmatmul.mubr.bf16.gmra.mxu0 %v203
        %v367 = vpop.f32.mrf.mxu0
        %v368 = vadd.f32 0.0, %v367
        %v369 = vpop.f32.mrf.mxu0
        %v370 = vadd.f32 0.0, %v369
        %v371 = vpop.f32.mrf.mxu0
        %v372 = vadd.f32 0.0, %v371
        %v373 = vpop.f32.mrf.mxu0
        %v374 = vadd.f32 0.0, %v373
        %375 = vdwg.mxu0
        %376 = vmatprep.subr.bf16.mxu0 0
        %377 = vmatpush1.bf16.msra.mxu0 %v308
        %378 = vmatprep.subr.bf16.mxu0 0
        %379 = vmatpush1.bf16.msra.mxu0 %v305
        %380 = vmatprep.subr.bf16.mxu0 0
        %381 = vmatpush1.bf16.msra.mxu0 %v302
        %382 = vmatprep.subr.bf16.mxu0 0
        %383 = vmatpush1.bf16.msra.mxu0 %v299
        %384 = vmatprep.subr.bf16.mxu0 0
        %385 = vmatpush1.bf16.msra.mxu0 %v296
        %386 = vmatprep.subr.bf16.mxu0 0
        %387 = vmatpush1.bf16.msra.mxu0 %v293
        %388 = vmatprep.subr.bf16.mxu0 0
        %389 = vmatpush1.bf16.msra.mxu0 %v290
        %390 = vmatprep.subr.bf16.mxu0 0
        %391 = vmatpush1.bf16.msra.mxu0 %v287
        %392 = vmatprep.subr.bf16.mxu0 0
        %393 = vmatpush2.bf16.msra.mxu0 0
        %394 = vmatprep.subr.bf16.mxu0 0
        %395 = vmatpush2.bf16.msra.mxu0 0
        %396 = vmatprep.subr.bf16.mxu0 0
        %397 = vmatpush2.bf16.msra.mxu0 0
        %398 = vmatprep.subr.bf16.mxu0 0
        %399 = vmatpush2.bf16.msra.mxu0 0
        %400 = vmatprep.subr.bf16.mxu0 0
        %401 = vmatpush2.bf16.msra.mxu0 0
        %402 = vmatprep.subr.bf16.mxu0 0
        %403 = vmatpush2.bf16.msra.mxu0 0
        %404 = vmatprep.subr.bf16.mxu0 0
        %405 = vmatpush2.bf16.msra.mxu0 0
        %406 = vmatprep.subr.bf16.mxu0 0
        %407 = vmatpush2.bf16.msra.mxu0 0
        %408 = vmatprep.mubr.bf16.mxu0 0
        %409 = vmatmul.mubr.bf16.gmra.mxu0 %v203
        %v410 = vpop.f32.mrf.mxu0
        %v411 = vadd.f32 0.0, %v410
        %v412 = vpop.f32.mrf.mxu0
        %v413 = vpop.f32.mrf.mxu0
        %v414 = vadd.f32 0.0, %v413
        %v415 = vpop.f32.mrf.mxu0
        %416 = vdwg.mxu0
        %v417 = vpack.c.bf16 %v372, %v368
        %v418 = vpack.c.bf16 %v374, %v370
        %v419 = vpack.c.bf16 %v414, %v411
        %v423 = vunpack.c.l.b16 %v417
        %v424 = vunpack.c.l.b16 %v418
        %v425 = vunpack.c.l.b16 %v419
        %v426 = vunpack.c.h.b16 %v417
        %v427 = vunpack.c.h.b16 %v418
        %v428 = vunpack.c.h.b16 %v419
        %v429 = vpack.c.b16 %v424, %v423
        %v430 = vpack.c.b16 %v425, %v425
        %v431 = vpack.c.b16 %v427, %v426
        %v432 = vpack.c.b16 %v428, %v428
        %437 = vst [vmem:[%s162] sm:$0xff] %v429
        %438 = vst [vmem:[%s162 + $0x8] sm:$0xf] %v430
        %439 = vst [vmem:[%s162 + $0xc] sm:$0xff] %v431
        %440 = vst [vmem:[%s162 + $0x14] sm:$0xf] %v432
        %s441 = smul.u32 2, %s14
        %p442 = scmp.lt.s32.totalorder %s441, 3
        %s443 = scalar_select %p442, %s441, 3
        %s444 = smul.addr %s443, 3
        %s445 = smul.addr %s444, 4
        %s446 = scalar_lea.vmem %s2, %s445
        // Predicated region
        $region33: #{vm_decoder_forward.3} parent=27 // pred_check
          %p447 = pneg %p79
        $region34: #{vm_decoder_forward.3} parent=27 // pred_check_branch
          %449 = sbr.rel (%p447) target = $region36
        $region35: #{vm_decoder_forward.3} parent=27 // pred_region
          %s450 = smul.u32 2, %s14
        $region36: #{vm_decoder_forward.3} parent=27 // pred_fallthru
          _
      $region28: #{vm_decoder_forward.3} parent=5 // pred_fallthru
        _
      %p451 = scmp.le.s32.totalorder 2, %s9
      // Predicated region
      $region37: #{vm_decoder_forward.3} parent=5 // pred_check
        %p452 = pneg %p451
      $region38: #{vm_decoder_forward.3} parent=5 // pred_check_branch
        %454 = sbr.rel (%p452) target = $region40
      $region39: #{vm_decoder_forward.3} parent=5 // pred_region
        %s455 = ssub.s32 %s9, 2
        // Predicated region
        $region41: #{vm_decoder_forward.3} parent=39 // pred_check
          %p456 = pneg %p85
        $region42: #{vm_decoder_forward.3} parent=39 // pred_check_branch
          %458 = sbr.rel (%p456) target = $region44
        $region43: #{vm_decoder_forward.3} parent=39 // pred_region
          %s459 = smul.u32 2, %s15
          %p460 = scmp.lt.s32.totalorder %s459, 3
          %s461 = scalar_select %p460, %s459, 3
          %s462 = smul.addr %s461, 3
          %s463 = smul.addr %s462, 4
          %s464 = scalar_lea.vmem %s2, %s463
        $region44: #{vm_decoder_forward.3} parent=39 // pred_fallthru
          _
      $region40: #{vm_decoder_forward.3} parent=5 // pred_fallthru
        _
    $region6: #{vm_decoder_forward.3} parent=1 // loop_footer
      %s13 = sadd.s32 1, %s9
    $region7: #{vm_decoder_forward.3} parent=1 // loop_footer_branch
      %8 = sbr.rel target = $region3
    $region8: #{vm_decoder_forward.3} parent=1 // loop_exit
      _
    %465 = vsyncpa [#allocation3], 1
    %s466 = scalar_lea.sflag [#allocation3], 1
    %467 = vsyncpa %s466, 1

// kernel: vm_decoder_forward.4
$region0: #{vm_decoder_forward.4}
  #allocation0 [shape = 'u32[]', space=smem, size = 0x4, offset = 0x4, fixed_abs, tag = 'smem constant byte address 0x4 - core index']
  #allocation1 [shape = 'u32[144,128]{1,0:T(1,128)}', space=vmem, size = 0x12000, scoped, tag = 'internal scratch']
  %s0 = inlined_call_operand.vmem [shape: bf16[4,8,384], index: 0, kind: input, shape index: {}]
  %s1 = inlined_call_operand.vmem [shape: bf16[4,8,128], index: 1, kind: output, shape index: {}]
  %s2 = sld [smem:[#allocation0]]
  $region37: #{vm_decoder_forward.4} parent=0
    _
  %s4 = ssub.s32 1, %s2
  %s5 = scalar_select 0, %s4, %s2
  loop: start=0, step=1, limit=6
  $region2: #{vm_decoder_forward.4} parent=0 // loop_pre_header
    _
  $region3: #{vm_decoder_forward.4} parent=0 // loop_header
    %s7 = sphi 0, %s11
    %p8 = scmp.ge.s32.totalorder %s7, 6
    %s17 = sphi 0, %s19
    %s20 = sphi 0, %s17
    %s21 = sphi 0, %s20
    %s37 = sphi 0, %s21
    %s43 = sphi 0, %s45
    %s46 = sphi 0, %s43
    %s47 = sphi 0, %s46
    %s63 = sphi 0, %s47
  $region4: #{vm_decoder_forward.4} parent=0 // loop_header_branch
    %10 = sbr.rel (%p8) target = $region8
  $region5: #{vm_decoder_forward.4} parent=0 // loop_body
    %s12 = ssub.s32 %s7, 1
    %s13 = ssub.s32 %s7, 2
    %s14 = sadd.s32 %s7, 1
    %s15 = ssub.s32 %s7, %s14
    %p16 = scmp.eq.s32.totalorder %s15, 0
    %s18 = sadd.s32 %s17, 1
    %s19 = scalar_select %p16, %s17, %s18
    %p22 = pneg %p16
    %p23 = scmp.eq.s32.totalorder %s7, 3
    %p24 = por %p22, %p23
    %p25 = scmp.ne.s32.totalorder %s17, %s20
    %p26 = scmp.eq.s32.totalorder %s7, 0
    %p27 = por %p25, %p26
    %p28 = scmp.ne.s32.totalorder %s17, %s20
    %p29 = scmp.eq.s32.totalorder %s12, 3
    %p30 = por %p28, %p29
    %p31 = scmp.ne.s32.totalorder %s20, %s21
    %p32 = scmp.eq.s32.totalorder %s12, 0
    %p33 = por %p31, %p32
    %p34 = scmp.ne.s32.totalorder %s20, %s21
    %p35 = scmp.eq.s32.totalorder %s13, 3
    %p36 = por %p34, %p35
    %p38 = scmp.ne.s32.totalorder %s21, %s37
    %p39 = scmp.eq.s32.totalorder %s13, 0
    %p40 = por %p38, %p39
    %s41 = ssub.s32 %s7, %s14
    %p42 = scmp.eq.s32.totalorder %s41, 0
    %s44 = sadd.s32 %s43, 1
    %s45 = scalar_select %p42, %s43, %s44
    %p48 = pneg %p42
    %p49 = scmp.eq.s32.totalorder %s7, 3
    %p50 = por %p48, %p49
    %p51 = scmp.ne.s32.totalorder %s43, %s46
    %p52 = scmp.eq.s32.totalorder %s7, 0
    %p53 = por %p51, %p52
    %p54 = scmp.ne.s32.totalorder %s43, %s46
    %p55 = scmp.eq.s32.totalorder %s12, 3
    %p56 = por %p54, %p55
    %p57 = scmp.ne.s32.totalorder %s46, %s47
    %p58 = scmp.eq.s32.totalorder %s12, 0
    %p59 = por %p57, %p58
    %p60 = scmp.ne.s32.totalorder %s46, %s47
    %p61 = scmp.eq.s32.totalorder %s13, 3
    %p62 = por %p60, %p61
    %p64 = scmp.ne.s32.totalorder %s47, %s63
    %p65 = scmp.eq.s32.totalorder %s13, 0
    %p66 = por %p64, %p65
    %p67 = scmp.le.s32.totalorder 1, %s7
    %p68 = scmp.lt.s32.totalorder %s7, 5
    %p69 = pnand %p67, %p68
    %p70 = pneg %p69
    // Predicated region
    $region9: #{vm_decoder_forward.4} parent=5 // pred_check
      _
    $region10: #{vm_decoder_forward.4} parent=5 // pred_check_branch
      %72 = sbr.rel (%p69) target = $region12
    $region11: #{vm_decoder_forward.4} parent=5 // pred_region
      %s73 = ssub.s32 %s7, 1
    $region12: #{vm_decoder_forward.4} parent=5 // pred_fallthru
      _
    %p74 = scmp.lt.s32.totalorder %s7, 4
    // Predicated region
    $region13: #{vm_decoder_forward.4} parent=5 // pred_check
      %p75 = pneg %p74
    $region14: #{vm_decoder_forward.4} parent=5 // pred_check_branch
      %77 = sbr.rel (%p75) target = $region16
    $region15: #{vm_decoder_forward.4} parent=5 // pred_region
      // Predicated region
      $region17: #{vm_decoder_forward.4} parent=15 // pred_check
        %p78 = pneg %p27
      $region18: #{vm_decoder_forward.4} parent=15 // pred_check_branch
        %80 = sbr.rel (%p78) target = $region20
      $region19: #{vm_decoder_forward.4} parent=15 // pred_region
        %p81 = scmp.lt.s32.totalorder %s7, 3
        %s82 = scalar_select %p81, %s7, 3
        %s83 = smul.addr %s82, 3
        %s84 = smul.addr %s83, 4
        %s85 = scalar_lea.vmem %s0, %s84
      $region20: #{vm_decoder_forward.4} parent=15 // pred_fallthru
        _
    $region16: #{vm_decoder_forward.4} parent=5 // pred_fallthru
      _
    %p86 = scmp.le.s32.totalorder 1, %s7
    %p87 = scmp.lt.s32.totalorder %s7, 5
    %p88 = pnand %p86, %p87
    %p89 = pneg %p88
    // Predicated region
    $region21: #{vm_decoder_forward.4} parent=5 // pred_check
      _
    $region22: #{vm_decoder_forward.4} parent=5 // pred_check_branch
      %91 = sbr.rel (%p88) target = $region24
    $region23: #{vm_decoder_forward.4} parent=5 // pred_region
      %s92 = ssub.s32 %s7, 1
      %p93 = scmp.lt.s32.totalorder %s12, 3
      %s94 = scalar_select %p93, %s12, 3
      %s95 = smul.addr %s94, 3
      %s96 = smul.addr %s95, 4
      %s97 = scalar_lea.vmem %s0, %s96
      %p98 = pneg %p33
      %p99 = pneg %p30
      %p100 = pneg %p59
      %p101 = pneg %p56
      %p102 = scmp.lt.s32.totalorder %s12, 3
      %s103 = scalar_select %p102, %s12, 3
      %s104 = smul.addr %s103, 4
      %s105 = scalar_lea.vmem %s1, %s104
      %p106 = scmp.lt.s32.totalorder %s12, 3
      %s107 = scalar_select %p106, %s12, 3
      %s108 = smul.addr %s107, 3
      %s109 = smul.addr %s108, 4
      %s110 = scalar_lea.vmem %s0, %s109
      %p111 = scmp.lt.s32.totalorder %s12, 3
      %s112 = scalar_select %p111, %s12, 3
      %s113 = smul.addr %s112, 4
      %s114 = scalar_lea.vmem %s1, %s113
      %v116 = vld [vmem:[%s110] sm:$0xff]
      %v117 = vld [vmem:[%s110 + $0x8] sm:$0xf]
      %v119 = vunpack.c.h.b16 %v116
      %v120 = vpack.c.b16 %v119, %v119
      %122 = vmatprep.subr.bf16.mxu0 0
      %123 = vmatpush1.bf16.xpose.msra.mxu0 0
      %124 = vmatprep.subr.bf16.mxu0 0
      %125 = vmatpush1.bf16.xpose.msra.mxu0 0
      %126 = vmatprep.subr.bf16.mxu0 0
      %127 = vmatpush1.bf16.xpose.msra.mxu0 0
      %128 = vmatprep.subr.bf16.mxu0 0
      %129 = vmatpush1.bf16.xpose.msra.mxu0 0
      %130 = vmatprep.subr.bf16.mxu0 0
      %131 = vmatpush1.bf16.xpose.msra.mxu0 0
      %132 = vmatprep.subr.bf16.mxu0 0
      %133 = vmatpush1.bf16.xpose.msra.mxu0 0
      %134 = vmatprep.subr.bf16.mxu0 0
      %135 = vmatpush1.bf16.xpose.msra.mxu0 0
      %136 = vmatprep.subr.bf16.mxu0 0
      %137 = vmatpush1.bf16.xpose.msra.mxu0 %v120
      %138 = vmatprep.subr.bf16.mxu0 0
      %139 = vmatpush2.bf16.xpose.msra.mxu0 0
      %140 = vmatprep.subr.bf16.mxu0 0
      %141 = vmatpush2.bf16.xpose.msra.mxu0 0
      %142 = vmatprep.subr.bf16.mxu0 0
      %143 = vmatpush2.bf16.xpose.msra.mxu0 0
      %144 = vmatprep.subr.bf16.mxu0 0
      %145 = vmatpush2.bf16.xpose.msra.mxu0 0
      %146 = vmatprep.subr.bf16.mxu0 0
      %147 = vmatpush2.bf16.xpose.msra.mxu0 0
      %148 = vmatprep.subr.bf16.mxu0 0
      %149 = vmatpush2.bf16.xpose.msra.mxu0 0
      %150 = vmatprep.subr.bf16.mxu0 0
      %151 = vmatpush2.bf16.xpose.msra.mxu0 0
      %152 = vmatprep.subr.bf16.mxu0 0
      %153 = vmatpush2.bf16.xpose.msra.mxu0 0
      %154 = vmatprep.mubr.bf16.mxu0 0
      %155 = vmatmul.mubr.bf16.gmra.mxu0 %v116
      %v156 = vpop.f32.mrf.mxu0
      %v157 = vadd.f32 0.0, %v156
      %v158 = vpop.f32.mrf.mxu0
      %v159 = vpop.f32.mrf.mxu0
      %v160 = vpop.f32.mrf.mxu0
      %161 = vdwg.mxu0
      %v162 = vlaneseq
      %v163 = vshrl.u32 %v162, 7
      %v164 = vlaneseq
      %v165 = vand.u32 %v164, 127
      %vm166 = vcmp.gt.s32.totalorder %v165, %v163
      %v167 = vsel %vm166, -inf, %v157
      %vm168 = vcmask 64512
      %v169 = vsel %vm168, %v167, -inf
      %170 = vmax.xlane.f32.xlu0 %v169
      %v171 = vpop.xlane.xlu0 %170
      %v172 = vsub.f32 %v167, %v171
      %v173 = vmul.f32 %v172, 1.442695
      %v174 = vpow.pop %v173
      %v175 = vsel %vm168, %v174, 0.0
      %176 = vadd.xlane.f32.xlu0 %v175
      %v177 = vpop.xlane.xlu0 %176
      %v178 = vrcp.pop %v177
      %v179 = vmul.f32 %v174, %v178
      %v180 = vpack.c.bf16 %v179, %v179
      %v182 = vsel %vm168, %v180, 0
      %vm184 = vcmask 1043456
      %v186 = vsel %vm184, %v117, 0
      %188 = vmatprep.subr.bf16.mxu0 0
      %189 = vmatpush1.bf16.msra.mxu0 0
      %190 = vmatprep.subr.bf16.mxu0 0
      %191 = vmatpush1.bf16.msra.mxu0 0
      %192 = vmatprep.subr.bf16.mxu0 0
      %193 = vmatpush1.bf16.msra.mxu0 0
      %194 = vmatprep.subr.bf16.mxu0 0
      %195 = vmatpush1.bf16.msra.mxu0 0
      %196 = vmatprep.subr.bf16.mxu0 0
      %197 = vmatpush1.bf16.msra.mxu0 0
      %198 = vmatprep.subr.bf16.mxu0 0
      %199 = vmatpush1.bf16.msra.mxu0 0
      %200 = vmatprep.subr.bf16.mxu0 0
      %201 = vmatpush1.bf16.msra.mxu0 0
      %202 = vmatprep.subr.bf16.mxu0 0
      %203 = vmatpush1.bf16.msra.mxu0 %v186
      %204 = vmatprep.subr.bf16.mxu0 0
      %205 = vmatpush2.bf16.msra.mxu0 0
      %206 = vmatprep.subr.bf16.mxu0 0
      %207 = vmatpush2.bf16.msra.mxu0 0
      %208 = vmatprep.subr.bf16.mxu0 0
      %209 = vmatpush2.bf16.msra.mxu0 0
      %210 = vmatprep.subr.bf16.mxu0 0
      %211 = vmatpush2.bf16.msra.mxu0 0
      %212 = vmatprep.subr.bf16.mxu0 0
      %213 = vmatpush2.bf16.msra.mxu0 0
      %214 = vmatprep.subr.bf16.mxu0 0
      %215 = vmatpush2.bf16.msra.mxu0 0
      %216 = vmatprep.subr.bf16.mxu0 0
      %217 = vmatpush2.bf16.msra.mxu0 0
      %218 = vmatprep.subr.bf16.mxu0 0
      %219 = vmatpush2.bf16.msra.mxu0 0
      %220 = vmatprep.mubr.bf16.mxu0 0
      %221 = vmatmul.mubr.bf16.gmra.mxu0 %v182
      %v222 = vpop.f32.mrf.mxu0
      %v223 = vadd.f32 0.0, %v222
      %v224 = vpop.f32.mrf.mxu0
      %v225 = vpop.f32.mrf.mxu0
      %v226 = vpop.f32.mrf.mxu0
      %227 = vdwg.mxu0
      %v228 = vpack.c.bf16 %v223, %v223
      %229 = vst [vmem:[%s114] sm:$0xf] %v228
      %p230 = scmp.lt.s32.totalorder %s12, 3
      %s231 = scalar_select %p230, %s12, 3
      %s232 = smul.addr %s231, 4
      %s233 = scalar_lea.vmem %s1, %s232
      // Predicated region
      $region25: #{vm_decoder_forward.4} parent=23 // pred_check
        %p234 = pneg %p56
      $region26: #{vm_decoder_forward.4} parent=23 // pred_check_branch
        %236 = sbr.rel (%p234) target = $region28
      $region27: #{vm_decoder_forward.4} parent=23 // pred_region
        _
      $region28: #{vm_decoder_forward.4} parent=23 // pred_fallthru
        _
    $region24: #{vm_decoder_forward.4} parent=5 // pred_fallthru
      _
    %p237 = scmp.le.s32.totalorder 2, %s7
    // Predicated region
    $region29: #{vm_decoder_forward.4} parent=5 // pred_check
      %p238 = pneg %p237
    $region30: #{vm_decoder_forward.4} parent=5 // pred_check_branch
      %240 = sbr.rel (%p238) target = $region32
    $region31: #{vm_decoder_forward.4} parent=5 // pred_region
      %s241 = ssub.s32 %s7, 2
      // Predicated region
      $region33: #{vm_decoder_forward.4} parent=31 // pred_check
        %p242 = pneg %p62
      $region34: #{vm_decoder_forward.4} parent=31 // pred_check_branch
        %244 = sbr.rel (%p242) target = $region36
      $region35: #{vm_decoder_forward.4} parent=31 // pred_region
        %p245 = scmp.lt.s32.totalorder %s13, 3
        %s246 = scalar_select %p245, %s13, 3
        %s247 = smul.addr %s246, 4
        %s248 = scalar_lea.vmem %s1, %s247
      $region36: #{vm_decoder_forward.4} parent=31 // pred_fallthru
        _
    $region32: #{vm_decoder_forward.4} parent=5 // pred_fallthru
      _
  $region6: #{vm_decoder_forward.4} parent=0 // loop_footer
    %s11 = sadd.s32 1, %s7
  $region7: #{vm_decoder_forward.4} parent=0 // loop_footer_branch
    %6 = sbr.rel target = $region3
  $region8: #{vm_decoder_forward.4} parent=0 // loop_exit
    _

// kernel: vm_decoder_forward.5
$region0: #{vm_decoder_forward.5}
  #allocation0 [shape = 'u32[]', space=smem, size = 0x4, offset = 0x4, fixed_abs, tag = 'smem constant byte address 0x4 - core index']
  #allocation1 [shape = 'u32[144,128]{1,0:T(1,128)}', space=vmem, size = 0x12000, scoped, tag = 'internal scratch']
  %s0 = inlined_call_operand.vmem [shape: bf16[32,128], index: 0, kind: input, shape index: {}]
  %s1 = inlined_call_operand.vmem [shape: bf16[32,128], index: 1, kind: input, shape index: {}]
  %s2 = inlined_call_operand.vmem [shape: bf16[128,128], index: 2, kind: input, shape index: {}]
  %s3 = inlined_call_operand.vmem [shape: f32[1,128], index: 3, kind: input, shape index: {}]
  %s4 = inlined_call_operand.vmem [shape: bf16[128,512], index: 4, kind: input, shape index: {}]
  %s5 = inlined_call_operand.vmem [shape: f32[1,512], index: 5, kind: input, shape index: {}]
  %s6 = inlined_call_operand.hbm [shape: bf16[512,128], index: 6, kind: input, shape index: {}]
  %s7 = inlined_call_operand.vmem [shape: f32[1,128], index: 7, kind: input, shape index: {}]
  %s8 = inlined_call_operand.hbm [shape: bf16[128,512], index: 8, kind: input, shape index: {}]
  %s9 = inlined_call_operand.vmem [shape: f32[1,512], index: 9, kind: input, shape index: {}]
  %s10 = inlined_call_operand.hbm [shape: bf16[512,128], index: 10, kind: input, shape index: {}]
  %s11 = inlined_call_operand.vmem [shape: f32[1,128], index: 11, kind: input, shape index: {}]
  %s12 = inlined_call_operand.vmem [shape: f32[32,128], index: 12, kind: output, shape index: {}]
  %s13 = sld [smem:[#allocation0]]
  $region93: #{vm_decoder_forward.5} parent=0
    _
  %s15 = ssub.s32 1, %s13
  %s16 = scalar_select 0, %s15, %s13
  $region1: #{vm_decoder_forward.5} parent=0
    #allocation2 [shape = 'u8[131072]{0}', space=vmem, size = 0x20000, scoped, tag = 'input window, operand 6, single buffered']
    #allocation3 [shape = 's32[2]{0}', space=sflag, size = 0x8, scoped, tag = 'scoped memory for vm_decoder_forward.5']
    #allocation4 [shape = 'u8[131072]{0}', space=vmem, size = 0x20000, scoped, tag = 'input window, operand 8, single buffered']
    #allocation5 [shape = 's32[1]{0}', space=sflag, size = 0x4, scoped, tag = 'scoped memory for vm_decoder_forward.5']
    #allocation6 [shape = 'u8[131072]{0}', space=vmem, size = 0x20000, scoped, tag = 'input window, operand 10, single buffered']
    %17 = vsyncpa [#allocation3], 0
    %18 = vsyncpa [#allocation5], 0
    loop: start=0, step=1, limit=4
    $region2: #{vm_decoder_forward.5} parent=1 // loop_pre_header
      _
    $region3: #{vm_decoder_forward.5} parent=1 // loop_header
      %s20 = sphi 0, %s24
      %p21 = scmp.ge.s32.totalorder %s20, 4
      %s30 = sphi 0, %s32
      %s33 = sphi 0, %s30
      %s34 = sphi 0, %s33
      %s50 = sphi 0, %s34
      %s56 = sphi 0, %s58
      %s59 = sphi 0, %s56
      %s60 = sphi 0, %s59
      %s76 = sphi 0, %s60
      %s80 = sphi 0, %s80
      %s82 = sphi 0, %s80
      %s83 = sphi 0, %s82
      %s97 = sphi 0, %s83
      %s101 = sphi 0, %s101
      %s103 = sphi 0, %s101
      %s104 = sphi 0, %s103
      %s118 = sphi 0, %s104
      %s122 = sphi 0, %s122
      %s124 = sphi 0, %s122
      %s125 = sphi 0, %s124
      %s139 = sphi 0, %s125
      %s143 = sphi 0, %s143
      %s145 = sphi 0, %s143
      %s146 = sphi 0, %s145
      %s160 = sphi 0, %s146
      %s164 = sphi 0, %s164
      %s166 = sphi 0, %s164
      %s167 = sphi 0, %s166
      %s181 = sphi 0, %s167
      %s185 = sphi 0, %s185
      %s187 = sphi 0, %s185
      %s188 = sphi 0, %s187
      %s202 = sphi 0, %s188
      %s206 = sphi 0, %s206
      %s208 = sphi 0, %s206
      %s209 = sphi 0, %s208
      %s223 = sphi 0, %s209
      %s227 = sphi 0, %s227
      %s229 = sphi 0, %s227
      %s230 = sphi 0, %s229
      %s244 = sphi 0, %s230
      %s248 = sphi 0, %s248
      %s250 = sphi 0, %s248
      %s251 = sphi 0, %s250
      %s265 = sphi 0, %s251
      %s269 = sphi 0, %s269
      %s271 = sphi 0, %s269
      %s272 = sphi 0, %s271
      %s286 = sphi 0, %s272
      %s292 = sphi 0, %s294
      %s295 = sphi 0, %s292
      %s296 = sphi 0, %s295
      %s312 = sphi 0, %s296
    $region4: #{vm_decoder_forward.5} parent=1 // loop_header_branch
      %23 = sbr.rel (%p21) target = $region8
    $region5: #{vm_decoder_forward.5} parent=1 // loop_body
      %s25 = ssub.s32 %s20, 1
      %s26 = ssub.s32 %s20, 2
      %s27 = sadd.s32 %s20, 1
      %s28 = ssub.s32 %s20, %s27
      %p29 = scmp.eq.s32.totalorder %s28, 0
      %s31 = sadd.s32 %s30, 1
      %s32 = scalar_select %p29, %s30, %s31
      %p35 = pneg %p29
      %p36 = scmp.eq.s32.totalorder %s20, 1
      %p37 = por %p35, %p36
      %p38 = scmp.ne.s32.totalorder %s30, %s33
      %p39 = scmp.eq.s32.totalorder %s20, 0
      %p40 = por %p38, %p39
      %p41 = scmp.ne.s32.totalorder %s30, %s33
      %p42 = scmp.eq.s32.totalorder %s25, 1
      %p43 = por %p41, %p42
      %p44 = scmp.ne.s32.totalorder %s33, %s34
      %p45 = scmp.eq.s32.totalorder %s25, 0
      %p46 = por %p44, %p45
      %p47 = scmp.ne.s32.totalorder %s33, %s34
      %p48 = scmp.eq.s32.totalorder %s26, 1
      %p49 = por %p47, %p48
      %p51 = scmp.ne.s32.totalorder %s34, %s50
      %p52 = scmp.eq.s32.totalorder %s26, 0
      %p53 = por %p51, %p52
      %s54 = ssub.s32 %s20, %s27
      %p55 = scmp.eq.s32.totalorder %s54, 0
      %s57 = sadd.s32 %s56, 1
      %s58 = scalar_select %p55, %s56, %s57
      %p61 = pneg %p55
      %p62 = scmp.eq.s32.totalorder %s20, 1
      %p63 = por %p61, %p62
      %p64 = scmp.ne.s32.totalorder %s56, %s59
      %p65 = scmp.eq.s32.totalorder %s20, 0
      %p66 = por %p64, %p65
      %p67 = scmp.ne.s32.totalorder %s56, %s59
      %p68 = scmp.eq.s32.totalorder %s25, 1
      %p69 = por %p67, %p68
      %p70 = scmp.ne.s32.totalorder %s59, %s60
      %p71 = scmp.eq.s32.totalorder %s25, 0
      %p72 = por %p70, %p71
      %p73 = scmp.ne.s32.totalorder %s59, %s60
      %p74 = scmp.eq.s32.totalorder %s26, 1
      %p75 = por %p73, %p74
      %p77 = scmp.ne.s32.totalorder %s60, %s76
      %p78 = scmp.eq.s32.totalorder %s26, 0
      %p79 = por %p77, %p78
      %s81 = sadd.s32 %s80, 1
      %p84 = scmp.eq.s32.totalorder %s20, 1
      %p85 = scmp.ne.s32.totalorder %s80, %s82
      %p86 = scmp.eq.s32.totalorder %s20, 0
      %p87 = por %p85, %p86
      %p88 = scmp.ne.s32.totalorder %s80, %s82
      %p89 = scmp.eq.s32.totalorder %s25, 1
      %p90 = por %p88, %p89
      %p91 = scmp.ne.s32.totalorder %s82, %s83
      %p92 = scmp.eq.s32.totalorder %s25, 0
      %p93 = por %p91, %p92
      %p94 = scmp.ne.s32.totalorder %s82, %s83
      %p95 = scmp.eq.s32.totalorder %s26, 1
      %p96 = por %p94, %p95
      %p98 = scmp.ne.s32.totalorder %s83, %s97
      %p99 = scmp.eq.s32.totalorder %s26, 0
      %p100 = por %p98, %p99
      %s102 = sadd.s32 %s101, 1
      %p105 = scmp.eq.s32.totalorder %s20, 1
      %p106 = scmp.ne.s32.totalorder %s101, %s103
      %p107 = scmp.eq.s32.totalorder %s20, 0
      %p108 = por %p106, %p107
      %p109 = scmp.ne.s32.totalorder %s101, %s103
      %p110 = scmp.eq.s32.totalorder %s25, 1
      %p111 = por %p109, %p110
      %p112 = scmp.ne.s32.totalorder %s103, %s104
      %p113 = scmp.eq.s32.totalorder %s25, 0
      %p114 = por %p112, %p113
      %p115 = scmp.ne.s32.totalorder %s103, %s104
      %p116 = scmp.eq.s32.totalorder %s26, 1
      %p117 = por %p115, %p116
      %p119 = scmp.ne.s32.totalorder %s104, %s118
      %p120 = scmp.eq.s32.totalorder %s26, 0
      %p121 = por %p119, %p120
      %s123 = sadd.s32 %s122, 1
      %p126 = scmp.eq.s32.totalorder %s20, 1
      %p127 = scmp.ne.s32.totalorder %s122, %s124
      %p128 = scmp.eq.s32.totalorder %s20, 0
      %p129 = por %p127, %p128
      %p130 = scmp.ne.s32.totalorder %s122, %s124
      %p131 = scmp.eq.s32.totalorder %s25, 1
      %p132 = por %p130, %p131
      %p133 = scmp.ne.s32.totalorder %s124, %s125
      %p134 = scmp.eq.s32.totalorder %s25, 0
      %p135 = por %p133, %p134
      %p136 = scmp.ne.s32.totalorder %s124, %s125
      %p137 = scmp.eq.s32.totalorder %s26, 1
      %p138 = por %p136, %p137
      %p140 = scmp.ne.s32.totalorder %s125, %s139
      %p141 = scmp.eq.s32.totalorder %s26, 0
      %p142 = por %p140, %p141
      %s144 = sadd.s32 %s143, 1
      %p147 = scmp.eq.s32.totalorder %s20, 1
      %p148 = scmp.ne.s32.totalorder %s143, %s145
      %p149 = scmp.eq.s32.totalorder %s20, 0
      %p150 = por %p148, %p149
      %p151 = scmp.ne.s32.totalorder %s143, %s145
      %p152 = scmp.eq.s32.totalorder %s25, 1
      %p153 = por %p151, %p152
      %p154 = scmp.ne.s32.totalorder %s145, %s146
      %p155 = scmp.eq.s32.totalorder %s25, 0
      %p156 = por %p154, %p155
      %p157 = scmp.ne.s32.totalorder %s145, %s146
      %p158 = scmp.eq.s32.totalorder %s26, 1
      %p159 = por %p157, %p158
      %p161 = scmp.ne.s32.totalorder %s146, %s160
      %p162 = scmp.eq.s32.totalorder %s26, 0
      %p163 = por %p161, %p162
      %s165 = sadd.s32 %s164, 1
      %p168 = scmp.eq.s32.totalorder %s20, 1
      %p169 = scmp.ne.s32.totalorder %s164, %s166
      %p170 = scmp.eq.s32.totalorder %s20, 0
      %p171 = por %p169, %p170
      %p172 = scmp.ne.s32.totalorder %s164, %s166
      %p173 = scmp.eq.s32.totalorder %s25, 1
      %p174 = por %p172, %p173
      %p175 = scmp.ne.s32.totalorder %s166, %s167
      %p176 = scmp.eq.s32.totalorder %s25, 0
      %p177 = por %p175, %p176
      %p178 = scmp.ne.s32.totalorder %s166, %s167
      %p179 = scmp.eq.s32.totalorder %s26, 1
      %p180 = por %p178, %p179
      %p182 = scmp.ne.s32.totalorder %s167, %s181
      %p183 = scmp.eq.s32.totalorder %s26, 0
      %p184 = por %p182, %p183
      %s186 = sadd.s32 %s185, 1
      %p189 = scmp.eq.s32.totalorder %s20, 1
      %p190 = scmp.ne.s32.totalorder %s185, %s187
      %p191 = scmp.eq.s32.totalorder %s20, 0
      %p192 = por %p190, %p191
      %p193 = scmp.ne.s32.totalorder %s185, %s187
      %p194 = scmp.eq.s32.totalorder %s25, 1
      %p195 = por %p193, %p194
      %p196 = scmp.ne.s32.totalorder %s187, %s188
      %p197 = scmp.eq.s32.totalorder %s25, 0
      %p198 = por %p196, %p197
      %p199 = scmp.ne.s32.totalorder %s187, %s188
      %p200 = scmp.eq.s32.totalorder %s26, 1
      %p201 = por %p199, %p200
      %p203 = scmp.ne.s32.totalorder %s188, %s202
      %p204 = scmp.eq.s32.totalorder %s26, 0
      %p205 = por %p203, %p204
      %s207 = sadd.s32 %s206, 1
      %p210 = scmp.eq.s32.totalorder %s20, 1
      %p211 = scmp.ne.s32.totalorder %s206, %s208
      %p212 = scmp.eq.s32.totalorder %s20, 0
      %p213 = por %p211, %p212
      %p214 = scmp.ne.s32.totalorder %s206, %s208
      %p215 = scmp.eq.s32.totalorder %s25, 1
      %p216 = por %p214, %p215
      %p217 = scmp.ne.s32.totalorder %s208, %s209
      %p218 = scmp.eq.s32.totalorder %s25, 0
      %p219 = por %p217, %p218
      %p220 = scmp.ne.s32.totalorder %s208, %s209
      %p221 = scmp.eq.s32.totalorder %s26, 1
      %p222 = por %p220, %p221
      %p224 = scmp.ne.s32.totalorder %s209, %s223
      %p225 = scmp.eq.s32.totalorder %s26, 0
      %p226 = por %p224, %p225
      %s228 = sadd.s32 %s227, 1
      %p231 = scmp.eq.s32.totalorder %s20, 1
      %p232 = scmp.ne.s32.totalorder %s227, %s229
      %p233 = scmp.eq.s32.totalorder %s20, 0
      %p234 = por %p232, %p233
      %p235 = scmp.ne.s32.totalorder %s227, %s229
      %p236 = scmp.eq.s32.totalorder %s25, 1
      %p237 = por %p235, %p236
      %p238 = scmp.ne.s32.totalorder %s229, %s230
      %p239 = scmp.eq.s32.totalorder %s25, 0
      %p240 = por %p238, %p239
      %p241 = scmp.ne.s32.totalorder %s229, %s230
      %p242 = scmp.eq.s32.totalorder %s26, 1
      %p243 = por %p241, %p242
      %p245 = scmp.ne.s32.totalorder %s230, %s244
      %p246 = scmp.eq.s32.totalorder %s26, 0
      %p247 = por %p245, %p246
      %s249 = sadd.s32 %s248, 1
      %p252 = scmp.eq.s32.totalorder %s20, 1
      %p253 = scmp.ne.s32.totalorder %s248, %s250
      %p254 = scmp.eq.s32.totalorder %s20, 0
      %p255 = por %p253, %p254
      %p256 = scmp.ne.s32.totalorder %s248, %s250
      %p257 = scmp.eq.s32.totalorder %s25, 1
      %p258 = por %p256, %p257
      %p259 = scmp.ne.s32.totalorder %s250, %s251
      %p260 = scmp.eq.s32.totalorder %s25, 0
      %p261 = por %p259, %p260
      %p262 = scmp.ne.s32.totalorder %s250, %s251
      %p263 = scmp.eq.s32.totalorder %s26, 1
      %p264 = por %p262, %p263
      %p266 = scmp.ne.s32.totalorder %s251, %s265
      %p267 = scmp.eq.s32.totalorder %s26, 0
      %p268 = por %p266, %p267
      %s270 = sadd.s32 %s269, 1
      %p273 = scmp.eq.s32.totalorder %s20, 1
      %p274 = scmp.ne.s32.totalorder %s269, %s271
      %p275 = scmp.eq.s32.totalorder %s20, 0
      %p276 = por %p274, %p275
      %p277 = scmp.ne.s32.totalorder %s269, %s271
      %p278 = scmp.eq.s32.totalorder %s25, 1
      %p279 = por %p277, %p278
      %p280 = scmp.ne.s32.totalorder %s271, %s272
      %p281 = scmp.eq.s32.totalorder %s25, 0
      %p282 = por %p280, %p281
      %p283 = scmp.ne.s32.totalorder %s271, %s272
      %p284 = scmp.eq.s32.totalorder %s26, 1
      %p285 = por %p283, %p284
      %p287 = scmp.ne.s32.totalorder %s272, %s286
      %p288 = scmp.eq.s32.totalorder %s26, 0
      %p289 = por %p287, %p288
      %s290 = ssub.s32 %s20, %s27
      %p291 = scmp.eq.s32.totalorder %s290, 0
      %s293 = sadd.s32 %s292, 1
      %s294 = scalar_select %p291, %s292, %s293
      %p297 = pneg %p291
      %p298 = scmp.eq.s32.totalorder %s20, 1
      %p299 = por %p297, %p298
      %p300 = scmp.ne.s32.totalorder %s292, %s295
      %p301 = scmp.eq.s32.totalorder %s20, 0
      %p302 = por %p300, %p301
      %p303 = scmp.ne.s32.totalorder %s292, %s295
      %p304 = scmp.eq.s32.totalorder %s25, 1
      %p305 = por %p303, %p304
      %p306 = scmp.ne.s32.totalorder %s295, %s296
      %p307 = scmp.eq.s32.totalorder %s25, 0
      %p308 = por %p306, %p307
      %p309 = scmp.ne.s32.totalorder %s295, %s296
      %p310 = scmp.eq.s32.totalorder %s26, 1
      %p311 = por %p309, %p310
      %p313 = scmp.ne.s32.totalorder %s296, %s312
      %p314 = scmp.eq.s32.totalorder %s26, 0
      %p315 = por %p313, %p314
      %p316 = scmp.le.s32.totalorder 1, %s20
      %p317 = scmp.lt.s32.totalorder %s20, 3
      %p318 = pnand %p316, %p317
      %p319 = pneg %p318
      // Predicated region
      $region9: #{vm_decoder_forward.5} parent=5 // pred_check
        _
      $region10: #{vm_decoder_forward.5} parent=5 // pred_check_branch
        %321 = sbr.rel (%p318) target = $region12
      $region11: #{vm_decoder_forward.5} parent=5 // pred_region
        %s322 = ssub.s32 %s20, 1
        // Predicated region
        $region13: #{vm_decoder_forward.5} parent=11 // pred_check
          %p323 = pneg %p93
        $region14: #{vm_decoder_forward.5} parent=11 // pred_check_branch
          %325 = sbr.rel (%p323) target = $region16
        $region15: #{vm_decoder_forward.5} parent=11 // pred_region
          _
        $region16: #{vm_decoder_forward.5} parent=11 // pred_fallthru
          _
        // Predicated region
        $region17: #{vm_decoder_forward.5} parent=11 // pred_check
          %p326 = pneg %p114
        $region18: #{vm_decoder_forward.5} parent=11 // pred_check_branch
          %328 = sbr.rel (%p326) target = $region20
        $region19: #{vm_decoder_forward.5} parent=11 // pred_region
          _
        $region20: #{vm_decoder_forward.5} parent=11 // pred_fallthru
          _
        // Predicated region
        $region21: #{vm_decoder_forward.5} parent=11 // pred_check
          %p329 = pneg %p135
        $region22: #{vm_decoder_forward.5} parent=11 // pred_check_branch
          %331 = sbr.rel (%p329) target = $region24
        $region23: #{vm_decoder_forward.5} parent=11 // pred_region
          _
        $region24: #{vm_decoder_forward.5} parent=11 // pred_fallthru
          _
        // Predicated region
        $region25: #{vm_decoder_forward.5} parent=11 // pred_check
          %p332 = pneg %p156
        $region26: #{vm_decoder_forward.5} parent=11 // pred_check_branch
          %334 = sbr.rel (%p332) target = $region28
        $region27: #{vm_decoder_forward.5} parent=11 // pred_region
          _
        $region28: #{vm_decoder_forward.5} parent=11 // pred_fallthru
          _
        // Predicated region
        $region29: #{vm_decoder_forward.5} parent=11 // pred_check
          %p335 = pneg %p177
        $region30: #{vm_decoder_forward.5} parent=11 // pred_check_branch
          %337 = sbr.rel (%p335) target = $region32
        $region31: #{vm_decoder_forward.5} parent=11 // pred_region
          %s339 = ssub.s32 4096, 4096
          %340 = vsyncadd [#allocation3], %s339
          %s341 = sshll.u32 [#allocation2], 4
          %s342 = int_to_ptr.vmem [resolvable:$true] %s341
          %347 = dma.hbm_to_vmem [thread:$0]  %s6, 4096, %s342, [#allocation3], 64, 64, 4
        $region32: #{vm_decoder_forward.5} parent=11 // pred_fallthru
          _
        // Predicated region
        $region33: #{vm_decoder_forward.5} parent=11 // pred_check
          %p348 = pneg %p198
        $region34: #{vm_decoder_forward.5} parent=11 // pred_check_branch
          %350 = sbr.rel (%p348) target = $region36
        $region35: #{vm_decoder_forward.5} parent=11 // pred_region
          _
        $region36: #{vm_decoder_forward.5} parent=11 // pred_fallthru
          _
        // Predicated region
        $region37: #{vm_decoder_forward.5} parent=11 // pred_check
          %p351 = pneg %p219
        $region38: #{vm_decoder_forward.5} parent=11 // pred_check_branch
          %353 = sbr.rel (%p351) target = $region40
        $region39: #{vm_decoder_forward.5} parent=11 // pred_region
          %s355 = ssub.s32 4096, 4096
          %356 = vsyncadd [#allocation5], %s355
          %s357 = sshll.u32 [#allocation4], 4
          %s358 = int_to_ptr.vmem [resolvable:$true] %s357
          %363 = dma.hbm_to_vmem [thread:$0]  %s8, 4096, %s358, [#allocation5], 256, 256, 16
        $region40: #{vm_decoder_forward.5} parent=11 // pred_fallthru
          _
        // Predicated region
        $region41: #{vm_decoder_forward.5} parent=11 // pred_check
          %p364 = pneg %p240
        $region42: #{vm_decoder_forward.5} parent=11 // pred_check_branch
          %366 = sbr.rel (%p364) target = $region44
        $region43: #{vm_decoder_forward.5} parent=11 // pred_region
          _
        $region44: #{vm_decoder_forward.5} parent=11 // pred_fallthru
          _
        // Predicated region
        $region45: #{vm_decoder_forward.5} parent=11 // pred_check
          %p367 = pneg %p261
        $region46: #{vm_decoder_forward.5} parent=11 // pred_check_branch
          %369 = sbr.rel (%p367) target = $region48
        $region47: #{vm_decoder_forward.5} parent=11 // pred_region
          %s371 = ssub.s32 4096, 4096
          %372 = vsyncadd [#allocation5], %s371
          %s373 = sshll.u32 [#allocation6], 4
          %s374 = int_to_ptr.vmem [resolvable:$true] %s373
          %379 = dma.hbm_to_vmem [thread:$0]  %s10, 4096, %s374, [#allocation5], 64, 64, 4
        $region48: #{vm_decoder_forward.5} parent=11 // pred_fallthru
          _
        // Predicated region
        $region49: #{vm_decoder_forward.5} parent=11 // pred_check
          %p380 = pneg %p282
        $region50: #{vm_decoder_forward.5} parent=11 // pred_check_branch
          %382 = sbr.rel (%p380) target = $region52
        $region51: #{vm_decoder_forward.5} parent=11 // pred_region
          _
        $region52: #{vm_decoder_forward.5} parent=11 // pred_fallthru
          _
      $region12: #{vm_decoder_forward.5} parent=5 // pred_fallthru
        _
      %p383 = scmp.lt.s32.totalorder %s20, 2
      // Predicated region
      $region53: #{vm_decoder_forward.5} parent=5 // pred_check
        %p384 = pneg %p383
      $region54: #{vm_decoder_forward.5} parent=5 // pred_check_branch
        %386 = sbr.rel (%p384) target = $region56
      $region55: #{vm_decoder_forward.5} parent=5 // pred_region
        // Predicated region
        $region57: #{vm_decoder_forward.5} parent=55 // pred_check
          %p387 = pneg %p40
        $region58: #{vm_decoder_forward.5} parent=55 // pred_check_branch
          %389 = sbr.rel (%p387) target = $region60
        $region59: #{vm_decoder_forward.5} parent=55 // pred_region
          %s390 = smul.u32 2, %s20
          %p391 = scmp.lt.s32.totalorder %s390, 3
          %s392 = scalar_select %p391, %s390, 3
          %s393 = smul.addr %s392, 4
          %s394 = scalar_lea.vmem %s0, %s393
          %s395 = smul.u32 2, %s20
        $region60: #{vm_decoder_forward.5} parent=55 // pred_fallthru
          _
        // Predicated region
        $region61: #{vm_decoder_forward.5} parent=55 // pred_check
          %p396 = pneg %p66
        $region62: #{vm_decoder_forward.5} parent=55 // pred_check_branch
          %398 = sbr.rel (%p396) target = $region64
        $region63: #{vm_decoder_forward.5} parent=55 // pred_region
          %s399 = smul.u32 2, %s20
          %p400 = scmp.lt.s32.totalorder %s399, 3
          %s401 = scalar_select %p400, %s399, 3
          %s402 = smul.addr %s401, 4
          %s403 = scalar_lea.vmem %s1, %s402
          %s404 = smul.u32 2, %s20
        $region64: #{vm_decoder_forward.5} parent=55 // pred_fallthru
          _
      $region56: #{vm_decoder_forward.5} parent=5 // pred_fallthru
        _
      %p405 = scmp.le.s32.totalorder 1, %s20
      %p406 = scmp.lt.s32.totalorder %s20, 3
      %p407 = pnand %p405, %p406
      %p408 = pneg %p407
      // Predicated region
      $region65: #{vm_decoder_forward.5} parent=5 // pred_check
        _
      $region66: #{vm_decoder_forward.5} parent=5 // pred_check_branch
        %410 = sbr.rel (%p407) target = $region68
      $region67: #{vm_decoder_forward.5} parent=5 // pred_region
        %s411 = ssub.s32 %s20, 1
        // Predicated region
        $region69: #{vm_decoder_forward.5} parent=67 // pred_check
          %p412 = pneg %p177
        $region70: #{vm_decoder_forward.5} parent=67 // pred_check_branch
          %414 = sbr.rel (%p412) target = $region72
        $region71: #{vm_decoder_forward.5} parent=67 // pred_region
          %415 = dma.done [#allocation3], 4096
        $region72: #{vm_decoder_forward.5} parent=67 // pred_fallthru
          _
        // Predicated region
        $region73: #{vm_decoder_forward.5} parent=67 // pred_check
          %p416 = pneg %p219
        $region74: #{vm_decoder_forward.5} parent=67 // pred_check_branch
          %418 = sbr.rel (%p416) target = $region76
        $region75: #{vm_decoder_forward.5} parent=67 // pred_region
          %419 = dma.done [#allocation5], 4096
        $region76: #{vm_decoder_forward.5} parent=67 // pred_fallthru
          _
        // Predicated region
        $region77: #{vm_decoder_forward.5} parent=67 // pred_check
          %p420 = pneg %p261
        $region78: #{vm_decoder_forward.5} parent=67 // pred_check_branch
          %422 = sbr.rel (%p420) target = $region80
        $region79: #{vm_decoder_forward.5} parent=67 // pred_region
          %423 = dma.done [#allocation5], 4096
        $region80: #{vm_decoder_forward.5} parent=67 // pred_fallthru
          _
        %s424 = smul.u32 2, %s25
        %p425 = scmp.lt.s32.totalorder %s424, 3
        %s426 = scalar_select %p425, %s424, 3
        %s427 = smul.addr %s426, 4
        %s428 = scalar_lea.vmem %s0, %s427
        %p429 = pneg %p46
        %p430 = pneg %p43
        %s431 = smul.u32 2, %s25
        %p432 = scmp.lt.s32.totalorder %s431, 3
        %s433 = scalar_select %p432, %s431, 3
        %s434 = smul.addr %s433, 4
        %s435 = scalar_lea.vmem %s1, %s434
        %p436 = pneg %p72
        %p437 = pneg %p69
        %p438 = pneg %p93
        %p439 = pneg %p90
        %p440 = pneg %p114
        %p441 = pneg %p111
        %p442 = pneg %p135
        %p443 = pneg %p132
        %p444 = pneg %p156
        %p445 = pneg %p153
        %p446 = pneg %p177
        %p447 = pneg %p174
        %p448 = pneg %p198
        %p449 = pneg %p195
        %p450 = pneg %p219
        %p451 = pneg %p216
        %p452 = pneg %p240
        %p453 = pneg %p237
        %p454 = pneg %p261
        %p455 = pneg %p258
        %p456 = pneg %p282
        %p457 = pneg %p279
        %p458 = pneg %p308
        %p459 = pneg %p305
        %s460 = smul.u32 2, %s25
        %p461 = scmp.lt.s32.totalorder %s460, 3
        %s462 = scalar_select %p461, %s460, 3
        %s463 = smul.addr %s462, 8
        %s464 = scalar_lea.vmem %s12, %s463
        %s465 = smul.u32 2, %s25
        %p466 = scmp.lt.s32.totalorder %s465, 3
        %s467 = scalar_select %p466, %s465, 3
        %s468 = smul.addr %s467, 4
        %s469 = scalar_lea.vmem %s0, %s468
        %s470 = smul.u32 2, %s25
        %s471 = smul.u32 2, %s25
        %p472 = scmp.lt.s32.totalorder %s471, 3
        %s473 = scalar_select %p472, %s471, 3
        %s474 = smul.addr %s473, 4
        %s475 = scalar_lea.vmem %s1, %s474
        %s476 = smul.u32 2, %s25
        %s477 = smul.u32 2, %s25
        %p478 = scmp.lt.s32.totalorder %s477, 3
        %s479 = scalar_select %p478, %s477, 3
        %s480 = smul.addr %s479, 8
        %s481 = scalar_lea.vmem %s12, %s480
        %s482 = smul.u32 2, %s25
        %v484 = vld [vmem:[%s469] sm:$0xf]
        %v485 = vld [vmem:[%s469 + $0x4] sm:$0xf]
        %v486 = vld [vmem:[%s475] sm:$0xf]
        %v487 = vld [vmem:[%s475 + $0x4] sm:$0xf]
        %v488 = vld [vmem:[%s2] sm:$0xf]
        %v489 = vld [vmem:[%s2 + $0x4] sm:$0xf]
        %v490 = vld [vmem:[%s2 + $0x8] sm:$0xf]
        %v491 = vld [vmem:[%s2 + $0xc] sm:$0xf]
        %v492 = vld [vmem:[%s2 + $0x10] sm:$0xf]
        %v493 = vld [vmem:[%s2 + $0x14] sm:$0xf]
        %v494 = vld [vmem:[%s2 + $0x18] sm:$0xf]
        %v495 = vld [vmem:[%s2 + $0x1c] sm:$0xf]
        %v496 = vld [vmem:[%s2 + $0x20] sm:$0xf]
        %v497 = vld [vmem:[%s2 + $0x24] sm:$0xf]
        %v498 = vld [vmem:[%s2 + $0x28] sm:$0xf]
        %v499 = vld [vmem:[%s2 + $0x2c] sm:$0xf]
        %v500 = vld [vmem:[%s2 + $0x30] sm:$0xf]
        %v501 = vld [vmem:[%s2 + $0x34] sm:$0xf]
        %v502 = vld [vmem:[%s2 + $0x38] sm:$0xf]
        %v503 = vld [vmem:[%s2 + $0x3c] sm:$0xf]
        %v504 = vld [vmem:[%s3] sm:$0x1]
        %v506 = vlaneseq
        %v507 = vshrl.u32 %v506, 7
        %v508 = vsub.s32 0, %v507
        %v509 = vrot.slane %v504, %v508
        %v513 = vunpack.c.l.b16 %v486
        %v514 = vunpack.c.l.b16 %v487
        %v515 = vpack.c.b16 %v514, %v513
        %v533 = vunpack.c.l.b16 %v488
        %v534 = vunpack.c.l.b16 %v489
        %v535 = vunpack.c.l.b16 %v490
        %v536 = vunpack.c.l.b16 %v491
        %v537 = vunpack.c.l.b16 %v492
        %v538 = vunpack.c.l.b16 %v493
        %v539 = vunpack.c.l.b16 %v494
        %v540 = vunpack.c.l.b16 %v495
        %v541 = vunpack.c.l.b16 %v496
        %v542 = vunpack.c.l.b16 %v497
        %v543 = vunpack.c.l.b16 %v498
        %v544 = vunpack.c.l.b16 %v499
        %v545 = vunpack.c.l.b16 %v500
        %v546 = vunpack.c.l.b16 %v501
        %v547 = vunpack.c.l.b16 %v502
        %v548 = vunpack.c.l.b16 %v503
        %v549 = vpack.c.b16 %v534, %v533
        %v550 = vpack.c.b16 %v536, %v535
        %v551 = vpack.c.b16 %v538, %v537
        %v552 = vpack.c.b16 %v540, %v539
        %v553 = vpack.c.b16 %v542, %v541
        %v554 = vpack.c.b16 %v544, %v543
        %v555 = vpack.c.b16 %v546, %v545
        %v556 = vpack.c.b16 %v548, %v547
        %565 = vmatprep.subr.bf16.mxu0 0
        %566 = vmatpush1.bf16.msra.mxu0 %v556
        %567 = vmatprep.subr.bf16.mxu0 0
        %568 = vmatpush1.bf16.msra.mxu0 %v555
        %569 = vmatprep.subr.bf16.mxu0 0
        %570 = vmatpush1.bf16.msra.mxu0 %v554
        %571 = vmatprep.subr.bf16.mxu0 0
        %572 = vmatpush1.bf16.msra.mxu0 %v553
        %573 = vmatprep.subr.bf16.mxu0 0
        %574 = vmatpush1.bf16.msra.mxu0 %v552
        %575 = vmatprep.subr.bf16.mxu0 0
        %576 = vmatpush1.bf16.msra.mxu0 %v551
        %577 = vmatprep.subr.bf16.mxu0 0
        %578 = vmatpush1.bf16.msra.mxu0 %v550
        %579 = vmatprep.subr.bf16.mxu0 0
        %580 = vmatpush1.bf16.msra.mxu0 %v549
        %581 = vmatprep.subr.bf16.mxu0 0
        %582 = vmatpush2.bf16.msra.mxu0 0
        %583 = vmatprep.subr.bf16.mxu0 0
        %584 = vmatpush2.bf16.msra.mxu0 0
        %585 = vmatprep.subr.bf16.mxu0 0
        %586 = vmatpush2.bf16.msra.mxu0 0
        %587 = vmatprep.subr.bf16.mxu0 0
        %588 = vmatpush2.bf16.msra.mxu0 0
        %589 = vmatprep.subr.bf16.mxu0 0
        %590 = vmatpush2.bf16.msra.mxu0 0
        %591 = vmatprep.subr.bf16.mxu0 0
        %592 = vmatpush2.bf16.msra.mxu0 0
        %593 = vmatprep.subr.bf16.mxu0 0
        %594 = vmatpush2.bf16.msra.mxu0 0
        %595 = vmatprep.subr.bf16.mxu0 0
        %596 = vmatpush2.bf16.msra.mxu0 0
        %597 = vmatprep.mubr.bf16.mxu0 0
        %598 = vmatmul.mubr.bf16.gmra.mxu0 %v515
        %v599 = vpop.f32.mrf.mxu0
        %v600 = vadd.f32 %v509, %v599
        %v601 = vpop.f32.mrf.mxu0
        %v602 = vpop.f32.mrf.mxu0
        %v603 = vadd.f32 %v509, %v602
        %v604 = vpop.f32.mrf.mxu0
        %605 = vdwg.mxu0
        %v606 = vunpack.c.l.bf16 %v484
        %v607 = vunpack.c.l.bf16 %v485
        %v608 = vadd.f32 %v606, %v600
        %v609 = vadd.f32 %v607, %v603
        %v610 = vpack.c.bf16 %v609, %v608
        %v611 = vld [vmem:[%s4] sm:$0xff]
        %v612 = vld [vmem:[%s4 + $0x8] sm:$0xff]
        %v613 = vld [vmem:[%s4 + $0x10] sm:$0xff]
        %v614 = vld [vmem:[%s4 + $0x18] sm:$0xff]
        %v615 = vld [vmem:[%s4 + $0x20] sm:$0xff]
        %v616 = vld [vmem:[%s4 + $0x28] sm:$0xff]
        %v617 = vld [vmem:[%s4 + $0x30] sm:$0xff]
        %v618 = vld [vmem:[%s4 + $0x38] sm:$0xff]
        %v619 = vld [vmem:[%s4 + $0x40] sm:$0xff]
        %v620 = vld [vmem:[%s4 + $0x48] sm:$0xff]
        %v621 = vld [vmem:[%s4 + $0x50] sm:$0xff]
        %v622 = vld [vmem:[%s4 + $0x58] sm:$0xff]
        %v623 = vld [vmem:[%s4 + $0x60] sm:$0xff]
        %v624 = vld [vmem:[%s4 + $0x68] sm:$0xff]
        %v625 = vld [vmem:[%s4 + $0x70] sm:$0xff]
        %v626 = vld [vmem:[%s4 + $0x78] sm:$0xff]
        %v627 = vld [vmem:[%s4 + $0x80] sm:$0xff]
        %v628 = vld [vmem:[%s4 + $0x88] sm:$0xff]
        %v629 = vld [vmem:[%s4 + $0x90] sm:$0xff]
        %v630 = vld [vmem:[%s4 + $0x98] sm:$0xff]
        %v631 = vld [vmem:[%s4 + $0xa0] sm:$0xff]
        %v632 = vld [vmem:[%s4 + $0xa8] sm:$0xff]
        %v633 = vld [vmem:[%s4 + $0xb0] sm:$0xff]
        %v634 = vld [vmem:[%s4 + $0xb8] sm:$0xff]
        %v635 = vld [vmem:[%s4 + $0xc0] sm:$0xff]
        %v636 = vld [vmem:[%s4 + $0xc8] sm:$0xff]
        %v637 = vld [vmem:[%s4 + $0xd0] sm:$0xff]
        %v638 = vld [vmem:[%s4 + $0xd8] sm:$0xff]
        %v639 = vld [vmem:[%s4 + $0xe0] sm:$0xff]
        %v640 = vld [vmem:[%s4 + $0xe8] sm:$0xff]
        %v641 = vld [vmem:[%s4 + $0xf0] sm:$0xff]
        %v642 = vld [vmem:[%s4 + $0xf8] sm:$0xff]
        %v643 = vld [vmem:[%s5] sm:$0xf]
        %v645 = vlaneseq
        %v646 = vshrl.u32 %v645, 7
        %v647 = vsub.s32 0, %v646
        %v648 = vrot.slane %v643, %v647
        %v649 = vlaneseq
        %v650 = vshrl.u32 %v649, 7
        %v651 = vsub.s32 1, %v650
        %v652 = vrot.slane %v643, %v651
        %v653 = vlaneseq
        %v654 = vshrl.u32 %v653, 7
        %v655 = vsub.s32 2, %v654
        %v656 = vrot.slane %v643, %v655
        %v657 = vlaneseq
        %v658 = vshrl.u32 %v657, 7
        %v659 = vsub.s32 3, %v658
        %v660 = vrot.slane %v643, %v659
        %v697 = vunpack.c.l.b16 %v611
        %v698 = vunpack.c.h.b16 %v611
        %v699 = vunpack.c.l.b16 %v612
        %v700 = vunpack.c.h.b16 %v612
        %v701 = vunpack.c.l.b16 %v613
        %v702 = vunpack.c.h.b16 %v613
        %v703 = vunpack.c.l.b16 %v614
        %v704 = vunpack.c.h.b16 %v614
        %v705 = vunpack.c.l.b16 %v615
        %v706 = vunpack.c.h.b16 %v615
        %v707 = vunpack.c.l.b16 %v616
        %v708 = vunpack.c.h.b16 %v616
        %v709 = vunpack.c.l.b16 %v617
        %v710 = vunpack.c.h.b16 %v617
        %v711 = vunpack.c.l.b16 %v618
        %v712 = vunpack.c.h.b16 %v618
        %v713 = vunpack.c.l.b16 %v619
        %v714 = vunpack.c.h.b16 %v619
        %v715 = vunpack.c.l.b16 %v620
        %v716 = vunpack.c.h.b16 %v620
        %v717 = vunpack.c.l.b16 %v621
        %v718 = vunpack.c.h.b16 %v621
        %v719 = vunpack.c.l.b16 %v622
        %v720 = vunpack.c.h.b16 %v622
        %v721 = vunpack.c.l.b16 %v623
        %v722 = vunpack.c.h.b16 %v623
        %v723 = vunpack.c.l.b16 %v624
        %v724 = vunpack.c.h.b16 %v624
        %v725 = vunpack.c.l.b16 %v625
        %v726 = vunpack.c.h.b16 %v625
        %v727 = vunpack.c.l.b16 %v626
        %v728 = vunpack.c.h.b16 %v626
        %v729 = vunpack.c.l.b16 %v627
        %v730 = vunpack.c.h.b16 %v627
        %v731 = vunpack.c.l.b16 %v628
        %v732 = vunpack.c.h.b16 %v628
        %v733 = vunpack.c.l.b16 %v629
        %v734 = vunpack.c.h.b16 %v629
        %v735 = vunpack.c.l.b16 %v630
        %v736 = vunpack.c.h.b16 %v630
        %v737 = vunpack.c.l.b16 %v631
        %v738 = vunpack.c.h.b16 %v631
        %v739 = vunpack.c.l.b16 %v632
        %v740 = vunpack.c.h.b16 %v632
        %v741 = vunpack.c.l.b16 %v633
        %v742 = vunpack.c.h.b16 %v633
        %v743 = vunpack.c.l.b16 %v634
        %v744 = vunpack.c.h.b16 %v634
        %v745 = vunpack.c.l.b16 %v635
        %v746 = vunpack.c.h.b16 %v635
        %v747 = vunpack.c.l.b16 %v636
        %v748 = vunpack.c.h.b16 %v636
        %v749 = vunpack.c.l.b16 %v637
        %v750 = vunpack.c.h.b16 %v637
        %v751 = vunpack.c.l.b16 %v638
        %v752 = vunpack.c.h.b16 %v638
        %v753 = vunpack.c.l.b16 %v639
        %v754 = vunpack.c.h.b16 %v639
        %v755 = vunpack.c.l.b16 %v640
        %v756 = vunpack.c.h.b16 %v640
        %v757 = vunpack.c.l.b16 %v641
        %v758 = vunpack.c.h.b16 %v641
        %v759 = vunpack.c.l.b16 %v642
        %v760 = vunpack.c.h.b16 %v642
        %v761 = vpack.c.b16 %v701, %v697
        %v762 = vpack.c.b16 %v702, %v698
        %v763 = vpack.c.b16 %v703, %v699
        %v764 = vpack.c.b16 %v704, %v700
        %v765 = vpack.c.b16 %v709, %v705
        %v766 = vpack.c.b16 %v710, %v706
        %v767 = vpack.c.b16 %v711, %v707
        %v768 = vpack.c.b16 %v712, %v708
        %v769 = vpack.c.b16 %v717, %v713
        %v770 = vpack.c.b16 %v718, %v714
        %v771 = vpack.c.b16 %v719, %v715
        %v772 = vpack.c.b16 %v720, %v716
        %v773 = vpack.c.b16 %v725, %v721
        %v774 = vpack.c.b16 %v726, %v722
        %v775 = vpack.c.b16 %v727, %v723
        %v776 = vpack.c.b16 %v728, %v724
        %v777 = vpack.c.b16 %v733, %v729
        %v778 = vpack.c.b16 %v734, %v730
        %v779 = vpack.c.b16 %v735, %v731
        %v780 = vpack.c.b16 %v736, %v732
        %v781 = vpack.c.b16 %v741, %v737
        %v782 = vpack.c.b16 %v742, %v738
        %v783 = vpack.c.b16 %v743, %v739
        %v784 = vpack.c.b16 %v744, %v740
        %v785 = vpack.c.b16 %v749, %v745
        %v786 = vpack.c.b16 %v750, %v746
        %v787 = vpack.c.b16 %v751, %v747
        %v788 = vpack.c.b16 %v752, %v748
        %v789 = vpack.c.b16 %v757, %v753
        %v790 = vpack.c.b16 %v758, %v754
        %v791 = vpack.c.b16 %v759, %v755
        %v792 = vpack.c.b16 %v760, %v756
        %825 = vmatprep.subr.bf16.mxu0 %v790
        %826 = vmatpush1.bf16.msra.mxu0 %v789
        %827 = vmatprep.subr.bf16.mxu0 %v786
        %828 = vmatpush1.bf16.msra.mxu0 %v785
        %829 = vmatprep.subr.bf16.mxu0 %v782
        %830 = vmatpush1.bf16.msra.mxu0 %v781
        %831 = vmatprep.subr.bf16.mxu0 %v778
        %832 = vmatpush1.bf16.msra.mxu0 %v777
        %833 = vmatprep.subr.bf16.mxu0 %v774
        %834 = vmatpush1.bf16.msra.mxu0 %v773
        %835 = vmatprep.subr.bf16.mxu0 %v770
        %836 = vmatpush1.bf16.msra.mxu0 %v769
        %837 = vmatprep.subr.bf16.mxu0 %v766
        %838 = vmatpush1.bf16.msra.mxu0 %v765
        %839 = vmatprep.subr.bf16.mxu0 %v762
        %840 = vmatpush1.bf16.msra.mxu0 %v761
        %841 = vmatprep.subr.bf16.mxu0 0
        %842 = vmatpush2.bf16.msra.mxu0 0
        %843 = vmatprep.subr.bf16.mxu0 0
        %844 = vmatpush2.bf16.msra.mxu0 0
        %845 = vmatprep.subr.bf16.mxu0 0
        %846 = vmatpush2.bf16.msra.mxu0 0
        %847 = vmatprep.subr.bf16.mxu0 0
        %848 = vmatpush2.bf16.msra.mxu0 0
        %849 = vmatprep.subr.bf16.mxu0 0
        %850 = vmatpush2.bf16.msra.mxu0 0
        %851 = vmatprep.subr.bf16.mxu0 0
        %852 = vmatpush2.bf16.msra.mxu0 0
        %853 = vmatprep.subr.bf16.mxu0 0
        %854 = vmatpush2.bf16.msra.mxu0 0
        %855 = vmatprep.subr.bf16.mxu0 0
        %856 = vmatpush2.bf16.msra.mxu0 0
        %857 = vmatprep.mubr.bf16.mxu0 0
        %858 = vmatmul.mubr.bf16.gmra.mxu0 %v610
        %v859 = vpop.f32.mrf.mxu0
        %v860 = vadd.f32 %v648, %v859
        %v861 = vpop.f32.mrf.mxu0
        %v862 = vadd.f32 %v652, %v861
        %v863 = vpop.f32.mrf.mxu0
        %v864 = vadd.f32 %v648, %v863
        %v865 = vpop.f32.mrf.mxu0
        %v866 = vadd.f32 %v652, %v865
        %867 = vdwg.mxu0
        %868 = vmatprep.subr.bf16.mxu0 %v792
        %869 = vmatpush1.bf16.msra.mxu0 %v791
        %870 = vmatprep.subr.bf16.mxu0 %v788
        %871 = vmatpush1.bf16.msra.mxu0 %v787
        %872 = vmatprep.subr.bf16.mxu0 %v784
        %873 = vmatpush1.bf16.msra.mxu0 %v783
        %874 = vmatprep.subr.bf16.mxu0 %v780
        %875 = vmatpush1.bf16.msra.mxu0 %v779
        %876 = vmatprep.subr.bf16.mxu0 %v776
        %877 = vmatpush1.bf16.msra.mxu0 %v775
        %878 = vmatprep.subr.bf16.mxu0 %v772
        %879 = vmatpush1.bf16.msra.mxu0 %v771
        %880 = vmatprep.subr.bf16.mxu0 %v768
        %881 = vmatpush1.bf16.msra.mxu0 %v767
        %882 = vmatprep.subr.bf16.mxu0 %v764
        %883 = vmatpush1.bf16.msra.mxu0 %v763
        %884 = vmatprep.subr.bf16.mxu0 0
        %885 = vmatpush2.bf16.msra.mxu0 0
        %886 = vmatprep.subr.bf16.mxu0 0
        %887 = vmatpush2.bf16.msra.mxu0 0
        %888 = vmatprep.subr.bf16.mxu0 0
        %889 = vmatpush2.bf16.msra.mxu0 0
        %890 = vmatprep.subr.bf16.mxu0 0
        %891 = vmatpush2.bf16.msra.mxu0 0
        %892 = vmatprep.subr.bf16.mxu0 0
        %893 = vmatpush2.bf16.msra.mxu0 0
        %894 = vmatprep.subr.bf16.mxu0 0
        %895 = vmatpush2.bf16.msra.mxu0 0
        %896 = vmatprep.subr.bf16.mxu0 0
        %897 = vmatpush2.bf16.msra.mxu0 0
        %898 = vmatprep.subr.bf16.mxu0 0
        %899 = vmatpush2.bf16.msra.mxu0 0
        %900 = vmatprep.mubr.bf16.mxu0 0
        %901 = vmatmul.mubr.bf16.gmra.mxu0 %v610
        %v902 = vpop.f32.mrf.mxu0
        %v903 = vadd.f32 %v656, %v902
        %v904 = vpop.f32.mrf.mxu0
        %v905 = vadd.f32 %v660, %v904
        %v906 = vpop.f32.mrf.mxu0
        %v907 = vadd.f32 %v656, %v906
        %v908 = vpop.f32.mrf.mxu0
        %v909 = vadd.f32 %v660, %v908
        %910 = vdwg.mxu0
        %v911 = vmax.f32 %v860, 0.0
        %v912 = vmax.f32 %v862, 0.0
        %v913 = vmax.f32 %v903, 0.0
        %v914 = vmax.f32 %v905, 0.0
        %v915 = vmax.f32 %v864, 0.0
        %v916 = vmax.f32 %v866, 0.0
        %v917 = vmax.f32 %v907, 0.0
        %v918 = vmax.f32 %v909, 0.0
        %v919 = vpack.c.bf16 %v915, %v911
        %v920 = vpack.c.bf16 %v916, %v912
        %v921 = vpack.c.bf16 %v917, %v913
        %v922 = vpack.c.bf16 %v918, %v914
        %v923 = vld [vmem:[#allocation2] sm:$0xf]
        %v924 = vld [vmem:[#allocation2 + $0x4] sm:$0xf]
        %v925 = vld [vmem:[#allocation2 + $0x8] sm:$0xf]
        %v926 = vld [vmem:[#allocation2 + $0xc] sm:$0xf]
        %v927 = vld [vmem:[#allocation2 + $0x10] sm:$0xf]
        %v928 = vld [vmem:[#allocation2 + $0x14] sm:$0xf]
        %v929 = vld [vmem:[#allocation2 + $0x18] sm:$0xf]
        %v930 = vld [vmem:[#allocation2 + $0x1c] sm:$0xf]
        %v931 = vld [vmem:[#allocation2 + $0x20] sm:$0xf]
        %v932 = vld [vmem:[#allocation2 + $0x24] sm:$0xf]
        %v933 = vld [vmem:[#allocation2 + $0x28] sm:$0xf]
        %v934 = vld [vmem:[#allocation2 + $0x2c] sm:$0xf]
        %v935 = vld [vmem:[#allocation2 + $0x30] sm:$0xf]
        %v936 = vld [vmem:[#allocation2 + $0x34] sm:$0xf]
        %v937 = vld [vmem:[#allocation2 + $0x38] sm:$0xf]
        %v938 = vld [vmem:[#allocation2 + $0x3c] sm:$0xf]
        %v939 = vld [vmem:[#allocation2 + $0x40] sm:$0xf]
        %v940 = vld [vmem:[#allocation2 + $0x44] sm:$0xf]
        %v941 = vld [vmem:[#allocation2 + $0x48] sm:$0xf]
        %v942 = vld [vmem:[#allocation2 + $0x4c] sm:$0xf]
        %v943 = vld [vmem:[#allocation2 + $0x50] sm:$0xf]
        %v944 = vld [vmem:[#allocation2 + $0x54] sm:$0xf]
        %v945 = vld [vmem:[#allocation2 + $0x58] sm:$0xf]
        %v946 = vld [vmem:[#allocation2 + $0x5c] sm:$0xf]
        %v947 = vld [vmem:[#allocation2 + $0x60] sm:$0xf]
        %v948 = vld [vmem:[#allocation2 + $0x64] sm:$0xf]
        %v949 = vld [vmem:[#allocation2 + $0x68] sm:$0xf]
        %v950 = vld [vmem:[#allocation2 + $0x6c] sm:$0xf]
        %v951 = vld [vmem:[#allocation2 + $0x70] sm:$0xf]
        %v952 = vld [vmem:[#allocation2 + $0x74] sm:$0xf]
        %v953 = vld [vmem:[#allocation2 + $0x78] sm:$0xf]
        %v954 = vld [vmem:[#allocation2 + $0x7c] sm:$0xf]
        %v955 = vld [vmem:[#allocation2 + $0x80] sm:$0xf]
        %v956 = vld [vmem:[#allocation2 + $0x84] sm:$0xf]
        %v957 = vld [vmem:[#allocation2 + $0x88] sm:$0xf]
        %v958 = vld [vmem:[#allocation2 + $0x8c] sm:$0xf]
        %v959 = vld [vmem:[#allocation2 + $0x90] sm:$0xf]
        %v960 = vld [vmem:[#allocation2 + $0x94] sm:$0xf]
        %v961 = vld [vmem:[#allocation2 + $0x98] sm:$0xf]
        %v962 = vld [vmem:[#allocation2 + $0x9c] sm:$0xf]
        %v963 = vld [vmem:[#allocation2 + $0xa0] sm:$0xf]
        %v964 = vld [vmem:[#allocation2 + $0xa4] sm:$0xf]
        %v965 = vld [vmem:[#allocation2 + $0xa8] sm:$0xf]
        %v966 = vld [vmem:[#allocation2 + $0xac] sm:$0xf]
        %v967 = vld [vmem:[#allocation2 + $0xb0] sm:$0xf]
        %v968 = vld [vmem:[#allocation2 + $0xb4] sm:$0xf]
        %v969 = vld [vmem:[#allocation2 + $0xb8] sm:$0xf]
        %v970 = vld [vmem:[#allocation2 + $0xbc] sm:$0xf]
        %v971 = vld [vmem:[#allocation2 + $0xc0] sm:$0xf]
        %v972 = vld [vmem:[#allocation2 + $0xc4] sm:$0xf]
        %v973 = vld [vmem:[#allocation2 + $0xc8] sm:$0xf]
        %v974 = vld [vmem:[#allocation2 + $0xcc] sm:$0xf]
        %v975 = vld [vmem:[#allocation2 + $0xd0] sm:$0xf]
        %v976 = vld [vmem:[#allocation2 + $0xd4] sm:$0xf]
        %v977 = vld [vmem:[#allocation2 + $0xd8] sm:$0xf]
        %v978 = vld [vmem:[#allocation2 + $0xdc] sm:$0xf]
        %v979 = vld [vmem:[#allocation2 + $0xe0] sm:$0xf]
        %v980 = vld [vmem:[#allocation2 + $0xe4] sm:$0xf]
        %v981 = vld [vmem:[#allocation2 + $0xe8] sm:$0xf]
        %v982 = vld [vmem:[#allocation2 + $0xec] sm:$0xf]
        %v983 = vld [vmem:[#allocation2 + $0xf0] sm:$0xf]
        %v984 = vld [vmem:[#allocation2 + $0xf4] sm:$0xf]
        %v985 = vld [vmem:[#allocation2 + $0xf8] sm:$0xf]
        %v986 = vld [vmem:[#allocation2 + $0xfc] sm:$0xf]
        %v1051 = vunpack.c.l.b16 %v923
        %v1052 = vunpack.c.l.b16 %v924
        %v1053 = vunpack.c.l.b16 %v925
        %v1054 = vunpack.c.l.b16 %v926
        %v1055 = vunpack.c.l.b16 %v927
        %v1056 = vunpack.c.l.b16 %v928
        %v1057 = vunpack.c.l.b16 %v929
        %v1058 = vunpack.c.l.b16 %v930
        %v1059 = vunpack.c.l.b16 %v931
        %v1060 = vunpack.c.l.b16 %v932
        %v1061 = vunpack.c.l.b16 %v933
        %v1062 = vunpack.c.l.b16 %v934
        %v1063 = vunpack.c.l.b16 %v935
        %v1064 = vunpack.c.l.b16 %v936
        %v1065 = vunpack.c.l.b16 %v937
        %v1066 = vunpack.c.l.b16 %v938
        %v1067 = vunpack.c.l.b16 %v939
        %v1068 = vunpack.c.l.b16 %v940
        %v1069 = vunpack.c.l.b16 %v941
        %v1070 = vunpack.c.l.b16 %v942
        %v1071 = vunpack.c.l.b16 %v943
        %v1072 = vunpack.c.l.b16 %v944
        %v1073 = vunpack.c.l.b16 %v945
        %v1074 = vunpack.c.l.b16 %v946
        %v1075 = vunpack.c.l.b16 %v947
        %v1076 = vunpack.c.l.b16 %v948
        %v1077 = vunpack.c.l.b16 %v949
        %v1078 = vunpack.c.l.b16 %v950
        %v1079 = vunpack.c.l.b16 %v951
        %v1080 = vunpack.c.l.b16 %v952
        %v1081 = vunpack.c.l.b16 %v953
        %v1082 = vunpack.c.l.b16 %v954
        %v1083 = vunpack.c.l.b16 %v955
        %v1084 = vunpack.c.l.b16 %v956
        %v1085 = vunpack.c.l.b16 %v957
        %v1086 = vunpack.c.l.b16 %v958
        %v1087 = vunpack.c.l.b16 %v959
        %v1088 = vunpack.c.l.b16 %v960
        %v1089 = vunpack.c.l.b16 %v961
        %v1090 = vunpack.c.l.b16 %v962
        %v1091 = vunpack.c.l.b16 %v963
        %v1092 = vunpack.c.l.b16 %v964
        %v1093 = vunpack.c.l.b16 %v965
        %v1094 = vunpack.c.l.b16 %v966
        %v1095 = vunpack.c.l.b16 %v967
        %v1096 = vunpack.c.l.b16 %v968
        %v1097 = vunpack.c.l.b16 %v969
        %v1098 = vunpack.c.l.b16 %v970
        %v1099 = vunpack.c.l.b16 %v971
        %v1100 = vunpack.c.l.b16 %v972
        %v1101 = vunpack.c.l.b16 %v973
        %v1102 = vunpack.c.l.b16 %v974
        %v1103 = vunpack.c.l.b16 %v975
        %v1104 = vunpack.c.l.b16 %v976
        %v1105 = vunpack.c.l.b16 %v977
        %v1106 = vunpack.c.l.b16 %v978
        %v1107 = vunpack.c.l.b16 %v979
        %v1108 = vunpack.c.l.b16 %v980
        %v1109 = vunpack.c.l.b16 %v981
        %v1110 = vunpack.c.l.b16 %v982
        %v1111 = vunpack.c.l.b16 %v983
        %v1112 = vunpack.c.l.b16 %v984
        %v1113 = vunpack.c.l.b16 %v985
        %v1114 = vunpack.c.l.b16 %v986
        %v1115 = vpack.c.b16 %v1052, %v1051
        %v1116 = vpack.c.b16 %v1054, %v1053
        %v1117 = vpack.c.b16 %v1056, %v1055
        %v1118 = vpack.c.b16 %v1058, %v1057
        %v1119 = vpack.c.b16 %v1060, %v1059
        %v1120 = vpack.c.b16 %v1062, %v1061
        %v1121 = vpack.c.b16 %v1064, %v1063
        %v1122 = vpack.c.b16 %v1066, %v1065
        %v1123 = vpack.c.b16 %v1068, %v1067
        %v1124 = vpack.c.b16 %v1070, %v1069
        %v1125 = vpack.c.b16 %v1072, %v1071
        %v1126 = vpack.c.b16 %v1074, %v1073
        %v1127 = vpack.c.b16 %v1076, %v1075
        %v1128 = vpack.c.b16 %v1078, %v1077
        %v1129 = vpack.c.b16 %v1080, %v1079
        %v1130 = vpack.c.b16 %v1082, %v1081
        %v1131 = vpack.c.b16 %v1084, %v1083
        %v1132 = vpack.c.b16 %v1086, %v1085
        %v1133 = vpack.c.b16 %v1088, %v1087
        %v1134 = vpack.c.b16 %v1090, %v1089
        %v1135 = vpack.c.b16 %v1092, %v1091
        %v1136 = vpack.c.b16 %v1094, %v1093
        %v1137 = vpack.c.b16 %v1096, %v1095
        %v1138 = vpack.c.b16 %v1098, %v1097
        %v1139 = vpack.c.b16 %v1100, %v1099
        %v1140 = vpack.c.b16 %v1102, %v1101
        %v1141 = vpack.c.b16 %v1104, %v1103
        %v1142 = vpack.c.b16 %v1106, %v1105
        %v1143 = vpack.c.b16 %v1108, %v1107
        %v1144 = vpack.c.b16 %v1110, %v1109
        %v1145 = vpack.c.b16 %v1112, %v1111
        %v1146 = vpack.c.b16 %v1114, %v1113
        %1179 = vmatprep.subr.bf16.mxu0 0
        %1180 = vmatpush1.bf16.msra.mxu0 %v1122
        %1181 = vmatprep.subr.bf16.mxu0 0
        %1182 = vmatpush1.bf16.msra.mxu0 %v1121
        %1183 = vmatprep.subr.bf16.mxu0 0
        %1184 = vmatpush1.bf16.msra.mxu0 %v1120
        %1185 = vmatprep.subr.bf16.mxu0 0
        %1186 = vmatpush1.bf16.msra.mxu0 %v1119
        %1187 = vmatprep.subr.bf16.mxu0 0
        %1188 = vmatpush1.bf16.msra.mxu0 %v1118
        %1189 = vmatprep.subr.bf16.mxu0 0
        %1190 = vmatpush1.bf16.msra.mxu0 %v1117
        %1191 = vmatprep.subr.bf16.mxu0 0
        %1192 = vmatpush1.bf16.msra.mxu0 %v1116
        %1193 = vmatprep.subr.bf16.mxu0 0
        %1194 = vmatpush1.bf16.msra.mxu0 %v1115
        %1195 = vmatprep.subr.bf16.mxu0 0
        %1196 = vmatpush2.bf16.msra.mxu0 %v1130
        %1197 = vmatprep.subr.bf16.mxu0 0
        %1198 = vmatpush2.bf16.msra.mxu0 %v1129
        %1199 = vmatprep.subr.bf16.mxu0 0
        %1200 = vmatpush2.bf16.msra.mxu0 %v1128
        %1201 = vmatprep.subr.bf16.mxu0 0
        %1202 = vmatpush2.bf16.msra.mxu0 %v1127
        %1203 = vmatprep.subr.bf16.mxu0 0
        %1204 = vmatpush2.bf16.msra.mxu0 %v1126
        %1205 = vmatprep.subr.bf16.mxu0 0
        %1206 = vmatpush2.bf16.msra.mxu0 %v1125
        %1207 = vmatprep.subr.bf16.mxu0 0
        %1208 = vmatpush2.bf16.msra.mxu0 %v1124
        %1209 = vmatprep.subr.bf16.mxu0 0
        %1210 = vmatpush2.bf16.msra.mxu0 %v1123
        %1211 = vmatprep.mubr.bf16.mxu0 %v920
        %1212 = vmatmul.mubr.bf16.gmra.mxu0 %v919
        %v1213 = vpop.f32.mrf.mxu0
        %v1214 = vadd.f32 0.0, %v1213
        %v1215 = vpop.f32.mrf.mxu0
        %v1216 = vpop.f32.mrf.mxu0
        %v1217 = vadd.f32 0.0, %v1216
        %v1218 = vpop.f32.mrf.mxu0
        %1219 = vdwg.mxu0
        %1220 = vmatprep.subr.bf16.mxu0 0
        %1221 = vmatpush1.bf16.msra.mxu0 %v1138
        %1222 = vmatprep.subr.bf16.mxu0 0
        %1223 = vmatpush1.bf16.msra.mxu0 %v1137
        %1224 = vmatprep.subr.bf16.mxu0 0
        %1225 = vmatpush1.bf16.msra.mxu0 %v1136
        %1226 = vmatprep.subr.bf16.mxu0 0
        %1227 = vmatpush1.bf16.msra.mxu0 %v1135
        %1228 = vmatprep.subr.bf16.mxu0 0
        %1229 = vmatpush1.bf16.msra.mxu0 %v1134
        %1230 = vmatprep.subr.bf16.mxu0 0
        %1231 = vmatpush1.bf16.msra.mxu0 %v1133
        %1232 = vmatprep.subr.bf16.mxu0 0
        %1233 = vmatpush1.bf16.msra.mxu0 %v1132
        %1234 = vmatprep.subr.bf16.mxu0 0
        %1235 = vmatpush1.bf16.msra.mxu0 %v1131
        %1236 = vmatprep.subr.bf16.mxu0 0
        %1237 = vmatpush2.bf16.msra.mxu0 %v1146
        %1238 = vmatprep.subr.bf16.mxu0 0
        %1239 = vmatpush2.bf16.msra.mxu0 %v1145
        %1240 = vmatprep.subr.bf16.mxu0 0
        %1241 = vmatpush2.bf16.msra.mxu0 %v1144
        %1242 = vmatprep.subr.bf16.mxu0 0
        %1243 = vmatpush2.bf16.msra.mxu0 %v1143
        %1244 = vmatprep.subr.bf16.mxu0 0
        %1245 = vmatpush2.bf16.msra.mxu0 %v1142
        %1246 = vmatprep.subr.bf16.mxu0 0
        %1247 = vmatpush2.bf16.msra.mxu0 %v1141
        %1248 = vmatprep.subr.bf16.mxu0 0
        %1249 = vmatpush2.bf16.msra.mxu0 %v1140
        %1250 = vmatprep.subr.bf16.mxu0 0
        %1251 = vmatpush2.bf16.msra.mxu0 %v1139
        %1252 = vmatprep.mubr.bf16.mxu0 %v922
        %1253 = vmatmul.mubr.bf16.gmra.mxu0 %v921
        %v1254 = vpop.f32.mrf.mxu0
        %v1255 = vadd.f32 %v1214, %v1254
        %v1256 = vpop.f32.mrf.mxu0
        %v1257 = vpop.f32.mrf.mxu0
        %v1258 = vadd.f32 %v1217, %v1257
        %v1259 = vpop.f32.mrf.mxu0
        %1260 = vdwg.mxu0
        %v1261 = vadd.f32 %v608, %v1255
        %v1262 = vadd.f32 %v609, %v1258
        %v1263 = vld [vmem:[%s7] sm:$0x1]
        %v1265 = vlaneseq
        %v1266 = vshrl.u32 %v1265, 7
        %v1267 = vsub.s32 0, %v1266
        %v1268 = vrot.slane %v1263, %v1267
        %v1270 = vadd.f32 %v1261, %v1268
        %v1271 = vadd.f32 %v1262, %v1268
        %v1272 = vpack.c.bf16 %v1271, %v1270
        %v1273 = vld [vmem:[#allocation4] sm:$0xff]
        %v1274 = vld [vmem:[#allocation4 + $0x8] sm:$0xff]
        %v1275 = vld [vmem:[#allocation4 + $0x10] sm:$0xff]
        %v1276 = vld [vmem:[#allocation4 + $0x18] sm:$0xff]
        %v1277 = vld [vmem:[#allocation4 + $0x20] sm:$0xff]
        %v1278 = vld [vmem:[#allocation4 + $0x28] sm:$0xff]
        %v1279 = vld [vmem:[#allocation4 + $0x30] sm:$0xff]
        %v1280 = vld [vmem:[#allocation4 + $0x38] sm:$0xff]
        %v1281 = vld [vmem:[#allocation4 + $0x40] sm:$0xff]
        %v1282 = vld [vmem:[#allocation4 + $0x48] sm:$0xff]
        %v1283 = vld [vmem:[#allocation4 + $0x50] sm:$0xff]
        %v1284 = vld [vmem:[#allocation4 + $0x58] sm:$0xff]
        %v1285 = vld [vmem:[#allocation4 + $0x60] sm:$0xff]
        %v1286 = vld [vmem:[#allocation4 + $0x68] sm:$0xff]
        %v1287 = vld [vmem:[#allocation4 + $0x70] sm:$0xff]
        %v1288 = vld [vmem:[#allocation4 + $0x78] sm:$0xff]
        %v1289 = vld [vmem:[#allocation4 + $0x80] sm:$0xff]
        %v1290 = vld [vmem:[#allocation4 + $0x88] sm:$0xff]
        %v1291 = vld [vmem:[#allocation4 + $0x90] sm:$0xff]
        %v1292 = vld [vmem:[#allocation4 + $0x98] sm:$0xff]
        %v1293 = vld [vmem:[#allocation4 + $0xa0] sm:$0xff]
        %v1294 = vld [vmem:[#allocation4 + $0xa8] sm:$0xff]
        %v1295 = vld [vmem:[#allocation4 + $0xb0] sm:$0xff]
        %v1296 = vld [vmem:[#allocation4 + $0xb8] sm:$0xff]
        %v1297 = vld [vmem:[#allocation4 + $0xc0] sm:$0xff]
        %v1298 = vld [vmem:[#allocation4 + $0xc8] sm:$0xff]
        %v1299 = vld [vmem:[#allocation4 + $0xd0] sm:$0xff]
        %v1300 = vld [vmem:[#allocation4 + $0xd8] sm:$0xff]
        %v1301 = vld [vmem:[#allocation4 + $0xe0] sm:$0xff]
        %v1302 = vld [vmem:[#allocation4 + $0xe8] sm:$0xff]
        %v1303 = vld [vmem:[#allocation4 + $0xf0] sm:$0xff]
        %v1304 = vld [vmem:[#allocation4 + $0xf8] sm:$0xff]
        %v1305 = vld [vmem:[%s9] sm:$0xf]
        %v1307 = vlaneseq
        %v1308 = vshrl.u32 %v1307, 7
        %v1309 = vsub.s32 0, %v1308
        %v1310 = vrot.slane %v1305, %v1309
        %v1311 = vlaneseq
        %v1312 = vshrl.u32 %v1311, 7
        %v1313 = vsub.s32 1, %v1312
        %v1314 = vrot.slane %v1305, %v1313
        %v1315 = vlaneseq
        %v1316 = vshrl.u32 %v1315, 7
        %v1317 = vsub.s32 2, %v1316
        %v1318 = vrot.slane %v1305, %v1317
        %v1319 = vlaneseq
        %v1320 = vshrl.u32 %v1319, 7
        %v1321 = vsub.s32 3, %v1320
        %v1322 = vrot.slane %v1305, %v1321
        %v1359 = vunpack.c.l.b16 %v1273
        %v1360 = vunpack.c.h.b16 %v1273
        %v1361 = vunpack.c.l.b16 %v1274
        %v1362 = vunpack.c.h.b16 %v1274
        %v1363 = vunpack.c.l.b16 %v1275
        %v1364 = vunpack.c.h.b16 %v1275
        %v1365 = vunpack.c.l.b16 %v1276
        %v1366 = vunpack.c.h.b16 %v1276
        %v1367 = vunpack.c.l.b16 %v1277
        %v1368 = vunpack.c.h.b16 %v1277
        %v1369 = vunpack.c.l.b16 %v1278
        %v1370 = vunpack.c.h.b16 %v1278
        %v1371 = vunpack.c.l.b16 %v1279
        %v1372 = vunpack.c.h.b16 %v1279
        %v1373 = vunpack.c.l.b16 %v1280
        %v1374 = vunpack.c.h.b16 %v1280
        %v1375 = vunpack.c.l.b16 %v1281
        %v1376 = vunpack.c.h.b16 %v1281
        %v1377 = vunpack.c.l.b16 %v1282
        %v1378 = vunpack.c.h.b16 %v1282
        %v1379 = vunpack.c.l.b16 %v1283
        %v1380 = vunpack.c.h.b16 %v1283
        %v1381 = vunpack.c.l.b16 %v1284
        %v1382 = vunpack.c.h.b16 %v1284
        %v1383 = vunpack.c.l.b16 %v1285
        %v1384 = vunpack.c.h.b16 %v1285
        %v1385 = vunpack.c.l.b16 %v1286
        %v1386 = vunpack.c.h.b16 %v1286
        %v1387 = vunpack.c.l.b16 %v1287
        %v1388 = vunpack.c.h.b16 %v1287
        %v1389 = vunpack.c.l.b16 %v1288
        %v1390 = vunpack.c.h.b16 %v1288
        %v1391 = vunpack.c.l.b16 %v1289
        %v1392 = vunpack.c.h.b16 %v1289
        %v1393 = vunpack.c.l.b16 %v1290
        %v1394 = vunpack.c.h.b16 %v1290
        %v1395 = vunpack.c.l.b16 %v1291
        %v1396 = vunpack.c.h.b16 %v1291
        %v1397 = vunpack.c.l.b16 %v1292
        %v1398 = vunpack.c.h.b16 %v1292
        %v1399 = vunpack.c.l.b16 %v1293
        %v1400 = vunpack.c.h.b16 %v1293
        %v1401 = vunpack.c.l.b16 %v1294
        %v1402 = vunpack.c.h.b16 %v1294
        %v1403 = vunpack.c.l.b16 %v1295
        %v1404 = vunpack.c.h.b16 %v1295
        %v1405 = vunpack.c.l.b16 %v1296
        %v1406 = vunpack.c.h.b16 %v1296
        %v1407 = vunpack.c.l.b16 %v1297
        %v1408 = vunpack.c.h.b16 %v1297
        %v1409 = vunpack.c.l.b16 %v1298
        %v1410 = vunpack.c.h.b16 %v1298
        %v1411 = vunpack.c.l.b16 %v1299
        %v1412 = vunpack.c.h.b16 %v1299
        %v1413 = vunpack.c.l.b16 %v1300
        %v1414 = vunpack.c.h.b16 %v1300
        %v1415 = vunpack.c.l.b16 %v1301
        %v1416 = vunpack.c.h.b16 %v1301
        %v1417 = vunpack.c.l.b16 %v1302
        %v1418 = vunpack.c.h.b16 %v1302
        %v1419 = vunpack.c.l.b16 %v1303
        %v1420 = vunpack.c.h.b16 %v1303
        %v1421 = vunpack.c.l.b16 %v1304
        %v1422 = vunpack.c.h.b16 %v1304
        %v1423 = vpack.c.b16 %v1363, %v1359
        %v1424 = vpack.c.b16 %v1364, %v1360
        %v1425 = vpack.c.b16 %v1365, %v1361
        %v1426 = vpack.c.b16 %v1366, %v1362
        %v1427 = vpack.c.b16 %v1371, %v1367
        %v1428 = vpack.c.b16 %v1372, %v1368
        %v1429 = vpack.c.b16 %v1373, %v1369
        %v1430 = vpack.c.b16 %v1374, %v1370
        %v1431 = vpack.c.b16 %v1379, %v1375
        %v1432 = vpack.c.b16 %v1380, %v1376
        %v1433 = vpack.c.b16 %v1381, %v1377
        %v1434 = vpack.c.b16 %v1382, %v1378
        %v1435 = vpack.c.b16 %v1387, %v1383
        %v1436 = vpack.c.b16 %v1388, %v1384
        %v1437 = vpack.c.b16 %v1389, %v1385
        %v1438 = vpack.c.b16 %v1390, %v1386
        %v1439 = vpack.c.b16 %v1395, %v1391
        %v1440 = vpack.c.b16 %v1396, %v1392
        %v1441 = vpack.c.b16 %v1397, %v1393
        %v1442 = vpack.c.b16 %v1398, %v1394
        %v1443 = vpack.c.b16 %v1403, %v1399
        %v1444 = vpack.c.b16 %v1404, %v1400
        %v1445 = vpack.c.b16 %v1405, %v1401
        %v1446 = vpack.c.b16 %v1406, %v1402
        %v1447 = vpack.c.b16 %v1411, %v1407
        %v1448 = vpack.c.b16 %v1412, %v1408
        %v1449 = vpack.c.b16 %v1413, %v1409
        %v1450 = vpack.c.b16 %v1414, %v1410
        %v1451 = vpack.c.b16 %v1419, %v1415
        %v1452 = vpack.c.b16 %v1420, %v1416
        %v1453 = vpack.c.b16 %v1421, %v1417
        %v1454 = vpack.c.b16 %v1422, %v1418
        %1487 = vmatprep.subr.bf16.mxu0 %v1452
        %1488 = vmatpush1.bf16.msra.mxu0 %v1451
        %1489 = vmatprep.subr.bf16.mxu0 %v1448
        %1490 = vmatpush1.bf16.msra.mxu0 %v1447
        %1491 = vmatprep.subr.bf16.mxu0 %v1444
        %1492 = vmatpush1.bf16.msra.mxu0 %v1443
        %1493 = vmatprep.subr.bf16.mxu0 %v1440
        %1494 = vmatpush1.bf16.msra.mxu0 %v1439
        %1495 = vmatprep.subr.bf16.mxu0 %v1436
        %1496 = vmatpush1.bf16.msra.mxu0 %v1435
        %1497 = vmatprep.subr.bf16.mxu0 %v1432
        %1498 = vmatpush1.bf16.msra.mxu0 %v1431
        %1499 = vmatprep.subr.bf16.mxu0 %v1428
        %1500 = vmatpush1.bf16.msra.mxu0 %v1427
        %1501 = vmatprep.subr.bf16.mxu0 %v1424
        %1502 = vmatpush1.bf16.msra.mxu0 %v1423
        %1503 = vmatprep.subr.bf16.mxu0 0
        %1504 = vmatpush2.bf16.msra.mxu0 0
        %1505 = vmatprep.subr.bf16.mxu0 0
        %1506 = vmatpush2.bf16.msra.mxu0 0
        %1507 = vmatprep.subr.bf16.mxu0 0
        %1508 = vmatpush2.bf16.msra.mxu0 0
        %1509 = vmatprep.subr.bf16.mxu0 0
        %1510 = vmatpush2.bf16.msra.mxu0 0
        %1511 = vmatprep.subr.bf16.mxu0 0
        %1512 = vmatpush2.bf16.msra.mxu0 0
        %1513 = vmatprep.subr.bf16.mxu0 0
        %1514 = vmatpush2.bf16.msra.mxu0 0
        %1515 = vmatprep.subr.bf16.mxu0 0
        %1516 = vmatpush2.bf16.msra.mxu0 0
        %1517 = vmatprep.subr.bf16.mxu0 0
        %1518 = vmatpush2.bf16.msra.mxu0 0
        %1519 = vmatprep.mubr.bf16.mxu0 0
        %1520 = vmatmul.mubr.bf16.gmra.mxu0 %v1272
        %v1521 = vpop.f32.mrf.mxu0
        %v1522 = vadd.f32 %v1310, %v1521
        %v1523 = vpop.f32.mrf.mxu0
        %v1524 = vadd.f32 %v1314, %v1523
        %v1525 = vpop.f32.mrf.mxu0
        %v1526 = vadd.f32 %v1310, %v1525
        %v1527 = vpop.f32.mrf.mxu0
        %v1528 = vadd.f32 %v1314, %v1527
        %1529 = vdwg.mxu0
        %1530 = vmatprep.subr.bf16.mxu0 %v1454
        %1531 = vmatpush1.bf16.msra.mxu0 %v1453
        %1532 = vmatprep.subr.bf16.mxu0 %v1450
        %1533 = vmatpush1.bf16.msra.mxu0 %v1449
        %1534 = vmatprep.subr.bf16.mxu0 %v1446
        %1535 = vmatpush1.bf16.msra.mxu0 %v1445
        %1536 = vmatprep.subr.bf16.mxu0 %v1442
        %1537 = vmatpush1.bf16.msra.mxu0 %v1441
        %1538 = vmatprep.subr.bf16.mxu0 %v1438
        %1539 = vmatpush1.bf16.msra.mxu0 %v1437
        %1540 = vmatprep.subr.bf16.mxu0 %v1434
        %1541 = vmatpush1.bf16.msra.mxu0 %v1433
        %1542 = vmatprep.subr.bf16.mxu0 %v1430
        %1543 = vmatpush1.bf16.msra.mxu0 %v1429
        %1544 = vmatprep.subr.bf16.mxu0 %v1426
        %1545 = vmatpush1.bf16.msra.mxu0 %v1425
        %1546 = vmatprep.subr.bf16.mxu0 0
        %1547 = vmatpush2.bf16.msra.mxu0 0
        %1548 = vmatprep.subr.bf16.mxu0 0
        %1549 = vmatpush2.bf16.msra.mxu0 0
        %1550 = vmatprep.subr.bf16.mxu0 0
        %1551 = vmatpush2.bf16.msra.mxu0 0
        %1552 = vmatprep.subr.bf16.mxu0 0
        %1553 = vmatpush2.bf16.msra.mxu0 0
        %1554 = vmatprep.subr.bf16.mxu0 0
        %1555 = vmatpush2.bf16.msra.mxu0 0
        %1556 = vmatprep.subr.bf16.mxu0 0
        %1557 = vmatpush2.bf16.msra.mxu0 0
        %1558 = vmatprep.subr.bf16.mxu0 0
        %1559 = vmatpush2.bf16.msra.mxu0 0
        %1560 = vmatprep.subr.bf16.mxu0 0
        %1561 = vmatpush2.bf16.msra.mxu0 0
        %1562 = vmatprep.mubr.bf16.mxu0 0
        %1563 = vmatmul.mubr.bf16.gmra.mxu0 %v1272
        %v1564 = vpop.f32.mrf.mxu0
        %v1565 = vadd.f32 %v1318, %v1564
        %v1566 = vpop.f32.mrf.mxu0
        %v1567 = vadd.f32 %v1322, %v1566
        %v1568 = vpop.f32.mrf.mxu0
        %v1569 = vadd.f32 %v1318, %v1568
        %v1570 = vpop.f32.mrf.mxu0
        %v1571 = vadd.f32 %v1322, %v1570
        %1572 = vdwg.mxu0
        %v1573 = vpack.c.bf16 %v1526, %v1522
        %v1574 = vpack.c.bf16 %v1528, %v1524
        %v1575 = vpack.c.bf16 %v1569, %v1565
        %v1576 = vpack.c.bf16 %v1571, %v1567
        %v1577 = vld [vmem:[#allocation6] sm:$0xf]
        %v1578 = vld [vmem:[#allocation6 + $0x4] sm:$0xf]
        %v1579 = vld [vmem:[#allocation6 + $0x8] sm:$0xf]
        %v1580 = vld [vmem:[#allocation6 + $0xc] sm:$0xf]
        %v1581 = vld [vmem:[#allocation6 + $0x10] sm:$0xf]
        %v1582 = vld [vmem:[#allocation6 + $0x14] sm:$0xf]
        %v1583 = vld [vmem:[#allocation6 + $0x18] sm:$0xf]
        %v1584 = vld [vmem:[#allocation6 + $0x1c] sm:$0xf]
        %v1585 = vld [vmem:[#allocation6 + $0x20] sm:$0xf]
        %v1586 = vld [vmem:[#allocation6 + $0x24] sm:$0xf]
        %v1587 = vld [vmem:[#allocation6 + $0x28] sm:$0xf]
        %v1588 = vld [vmem:[#allocation6 + $0x2c] sm:$0xf]
        %v1589 = vld [vmem:[#allocation6 + $0x30] sm:$0xf]
        %v1590 = vld [vmem:[#allocation6 + $0x34] sm:$0xf]
        %v1591 = vld [vmem:[#allocation6 + $0x38] sm:$0xf]
        %v1592 = vld [vmem:[#allocation6 + $0x3c] sm:$0xf]
        %v1593 = vld [vmem:[#allocation6 + $0x40] sm:$0xf]
        %v1594 = vld [vmem:[#allocation6 + $0x44] sm:$0xf]
        %v1595 = vld [vmem:[#allocation6 + $0x48] sm:$0xf]
        %v1596 = vld [vmem:[#allocation6 + $0x4c] sm:$0xf]
        %v1597 = vld [vmem:[#allocation6 + $0x50] sm:$0xf]
        %v1598 = vld [vmem:[#allocation6 + $0x54] sm:$0xf]
        %v1599 = vld [vmem:[#allocation6 + $0x58] sm:$0xf]
        %v1600 = vld [vmem:[#allocation6 + $0x5c] sm:$0xf]
        %v1601 = vld [vmem:[#allocation6 + $0x60] sm:$0xf]
        %v1602 = vld [vmem:[#allocation6 + $0x64] sm:$0xf]
        %v1603 = vld [vmem:[#allocation6 + $0x68] sm:$0xf]
        %v1604 = vld [vmem:[#allocation6 + $0x6c] sm:$0xf]
        %v1605 = vld [vmem:[#allocation6 + $0x70] sm:$0xf]
        %v1606 = vld [vmem:[#allocation6 + $0x74] sm:$0xf]
        %v1607 = vld [vmem:[#allocation6 + $0x78] sm:$0xf]
        %v1608 = vld [vmem:[#allocation6 + $0x7c] sm:$0xf]
        %v1609 = vld [vmem:[#allocation6 + $0x80] sm:$0xf]
        %v1610 = vld [vmem:[#allocation6 + $0x84] sm:$0xf]
        %v1611 = vld [vmem:[#allocation6 + $0x88] sm:$0xf]
        %v1612 = vld [vmem:[#allocation6 + $0x8c] sm:$0xf]
        %v1613 = vld [vmem:[#allocation6 + $0x90] sm:$0xf]
        %v1614 = vld [vmem:[#allocation6 + $0x94] sm:$0xf]
        %v1615 = vld [vmem:[#allocation6 + $0x98] sm:$0xf]
        %v1616 = vld [vmem:[#allocation6 + $0x9c] sm:$0xf]
        %v1617 = vld [vmem:[#allocation6 + $0xa0] sm:$0xf]
        %v1618 = vld [vmem:[#allocation6 + $0xa4] sm:$0xf]
        %v1619 = vld [vmem:[#allocation6 + $0xa8] sm:$0xf]
        %v1620 = vld [vmem:[#allocation6 + $0xac] sm:$0xf]
        %v1621 = vld [vmem:[#allocation6 + $0xb0] sm:$0xf]
        %v1622 = vld [vmem:[#allocation6 + $0xb4] sm:$0xf]
        %v1623 = vld [vmem:[#allocation6 + $0xb8] sm:$0xf]
        %v1624 = vld [vmem:[#allocation6 + $0xbc] sm:$0xf]
        %v1625 = vld [vmem:[#allocation6 + $0xc0] sm:$0xf]
        %v1626 = vld [vmem:[#allocation6 + $0xc4] sm:$0xf]
        %v1627 = vld [vmem:[#allocation6 + $0xc8] sm:$0xf]
        %v1628 = vld [vmem:[#allocation6 + $0xcc] sm:$0xf]
        %v1629 = vld [vmem:[#allocation6 + $0xd0] sm:$0xf]
        %v1630 = vld [vmem:[#allocation6 + $0xd4] sm:$0xf]
        %v1631 = vld [vmem:[#allocation6 + $0xd8] sm:$0xf]
        %v1632 = vld [vmem:[#allocation6 + $0xdc] sm:$0xf]
        %v1633 = vld [vmem:[#allocation6 + $0xe0] sm:$0xf]
        %v1634 = vld [vmem:[#allocation6 + $0xe4] sm:$0xf]
        %v1635 = vld [vmem:[#allocation6 + $0xe8] sm:$0xf]
        %v1636 = vld [vmem:[#allocation6 + $0xec] sm:$0xf]
        %v1637 = vld [vmem:[#allocation6 + $0xf0] sm:$0xf]
        %v1638 = vld [vmem:[#allocation6 + $0xf4] sm:$0xf]
        %v1639 = vld [vmem:[#allocation6 + $0xf8] sm:$0xf]
        %v1640 = vld [vmem:[#allocation6 + $0xfc] sm:$0xf]
        %v1641 = vld [vmem:[%s11] sm:$0x1]
        %v1643 = vlaneseq
        %v1644 = vshrl.u32 %v1643, 7
        %v1645 = vsub.s32 0, %v1644
        %v1646 = vrot.slane %v1641, %v1645
        %v1712 = vunpack.c.l.b16 %v1577
        %v1713 = vunpack.c.l.b16 %v1578
        %v1714 = vunpack.c.l.b16 %v1579
        %v1715 = vunpack.c.l.b16 %v1580
        %v1716 = vunpack.c.l.b16 %v1581
        %v1717 = vunpack.c.l.b16 %v1582
        %v1718 = vunpack.c.l.b16 %v1583
        %v1719 = vunpack.c.l.b16 %v1584
        %v1720 = vunpack.c.l.b16 %v1585
        %v1721 = vunpack.c.l.b16 %v1586
        %v1722 = vunpack.c.l.b16 %v1587
        %v1723 = vunpack.c.l.b16 %v1588
        %v1724 = vunpack.c.l.b16 %v1589
        %v1725 = vunpack.c.l.b16 %v1590
        %v1726 = vunpack.c.l.b16 %v1591
        %v1727 = vunpack.c.l.b16 %v1592
        %v1728 = vunpack.c.l.b16 %v1593
        %v1729 = vunpack.c.l.b16 %v1594
        %v1730 = vunpack.c.l.b16 %v1595
        %v1731 = vunpack.c.l.b16 %v1596
        %v1732 = vunpack.c.l.b16 %v1597
        %v1733 = vunpack.c.l.b16 %v1598
        %v1734 = vunpack.c.l.b16 %v1599
        %v1735 = vunpack.c.l.b16 %v1600
        %v1736 = vunpack.c.l.b16 %v1601
        %v1737 = vunpack.c.l.b16 %v1602
        %v1738 = vunpack.c.l.b16 %v1603
        %v1739 = vunpack.c.l.b16 %v1604
        %v1740 = vunpack.c.l.b16 %v1605
        %v1741 = vunpack.c.l.b16 %v1606
        %v1742 = vunpack.c.l.b16 %v1607
        %v1743 = vunpack.c.l.b16 %v1608
        %v1744 = vunpack.c.l.b16 %v1609
        %v1745 = vunpack.c.l.b16 %v1610
        %v1746 = vunpack.c.l.b16 %v1611
        %v1747 = vunpack.c.l.b16 %v1612
        %v1748 = vunpack.c.l.b16 %v1613
        %v1749 = vunpack.c.l.b16 %v1614
        %v1750 = vunpack.c.l.b16 %v1615
        %v1751 = vunpack.c.l.b16 %v1616
        %v1752 = vunpack.c.l.b16 %v1617
        %v1753 = vunpack.c.l.b16 %v1618
        %v1754 = vunpack.c.l.b16 %v1619
        %v1755 = vunpack.c.l.b16 %v1620
        %v1756 = vunpack.c.l.b16 %v1621
        %v1757 = vunpack.c.l.b16 %v1622
        %v1758 = vunpack.c.l.b16 %v1623
        %v1759 = vunpack.c.l.b16 %v1624
        %v1760 = vunpack.c.l.b16 %v1625
        %v1761 = vunpack.c.l.b16 %v1626
        %v1762 = vunpack.c.l.b16 %v1627
        %v1763 = vunpack.c.l.b16 %v1628
        %v1764 = vunpack.c.l.b16 %v1629
        %v1765 = vunpack.c.l.b16 %v1630
        %v1766 = vunpack.c.l.b16 %v1631
        %v1767 = vunpack.c.l.b16 %v1632
        %v1768 = vunpack.c.l.b16 %v1633
        %v1769 = vunpack.c.l.b16 %v1634
        %v1770 = vunpack.c.l.b16 %v1635
        %v1771 = vunpack.c.l.b16 %v1636
        %v1772 = vunpack.c.l.b16 %v1637
        %v1773 = vunpack.c.l.b16 %v1638
        %v1774 = vunpack.c.l.b16 %v1639
        %v1775 = vunpack.c.l.b16 %v1640
        %v1776 = vpack.c.b16 %v1713, %v1712
        %v1777 = vpack.c.b16 %v1715, %v1714
        %v1778 = vpack.c.b16 %v1717, %v1716
        %v1779 = vpack.c.b16 %v1719, %v1718
        %v1780 = vpack.c.b16 %v1721, %v1720
        %v1781 = vpack.c.b16 %v1723, %v1722
        %v1782 = vpack.c.b16 %v1725, %v1724
        %v1783 = vpack.c.b16 %v1727, %v1726
        %v1784 = vpack.c.b16 %v1729, %v1728
        %v1785 = vpack.c.b16 %v1731, %v1730
        %v1786 = vpack.c.b16 %v1733, %v1732
        %v1787 = vpack.c.b16 %v1735, %v1734
        %v1788 = vpack.c.b16 %v1737, %v1736
        %v1789 = vpack.c.b16 %v1739, %v1738
        %v1790 = vpack.c.b16 %v1741, %v1740
        %v1791 = vpack.c.b16 %v1743, %v1742
        %v1792 = vpack.c.b16 %v1745, %v1744
        %v1793 = vpack.c.b16 %v1747, %v1746
        %v1794 = vpack.c.b16 %v1749, %v1748
        %v1795 = vpack.c.b16 %v1751, %v1750
        %v1796 = vpack.c.b16 %v1753, %v1752
        %v1797 = vpack.c.b16 %v1755, %v1754
        %v1798 = vpack.c.b16 %v1757, %v1756
        %v1799 = vpack.c.b16 %v1759, %v1758
        %v1800 = vpack.c.b16 %v1761, %v1760
        %v1801 = vpack.c.b16 %v1763, %v1762
        %v1802 = vpack.c.b16 %v1765, %v1764
        %v1803 = vpack.c.b16 %v1767, %v1766
        %v1804 = vpack.c.b16 %v1769, %v1768
        %v1805 = vpack.c.b16 %v1771, %v1770
        %v1806 = vpack.c.b16 %v1773, %v1772
        %v1807 = vpack.c.b16 %v1775, %v1774
        %1840 = vmatprep.subr.bf16.mxu0 0
        %1841 = vmatpush1.bf16.msra.mxu0 %v1783
        %1842 = vmatprep.subr.bf16.mxu0 0
        %1843 = vmatpush1.bf16.msra.mxu0 %v1782
        %1844 = vmatprep.subr.bf16.mxu0 0
        %1845 = vmatpush1.bf16.msra.mxu0 %v1781
        %1846 = vmatprep.subr.bf16.mxu0 0
        %1847 = vmatpush1.bf16.msra.mxu0 %v1780
        %1848 = vmatprep.subr.bf16.mxu0 0
        %1849 = vmatpush1.bf16.msra.mxu0 %v1779
        %1850 = vmatprep.subr.bf16.mxu0 0
        %1851 = vmatpush1.bf16.msra.mxu0 %v1778
        %1852 = vmatprep.subr.bf16.mxu0 0
        %1853 = vmatpush1.bf16.msra.mxu0 %v1777
        %1854 = vmatprep.subr.bf16.mxu0 0
        %1855 = vmatpush1.bf16.msra.mxu0 %v1776
        %1856 = vmatprep.subr.bf16.mxu0 0
        %1857 = vmatpush2.bf16.msra.mxu0 %v1791
        %1858 = vmatprep.subr.bf16.mxu0 0
        %1859 = vmatpush2.bf16.msra.mxu0 %v1790
        %1860 = vmatprep.subr.bf16.mxu0 0
        %1861 = vmatpush2.bf16.msra.mxu0 %v1789
        %1862 = vmatprep.subr.bf16.mxu0 0
        %1863 = vmatpush2.bf16.msra.mxu0 %v1788
        %1864 = vmatprep.subr.bf16.mxu0 0
        %1865 = vmatpush2.bf16.msra.mxu0 %v1787
        %1866 = vmatprep.subr.bf16.mxu0 0
        %1867 = vmatpush2.bf16.msra.mxu0 %v1786
        %1868 = vmatprep.subr.bf16.mxu0 0
        %1869 = vmatpush2.bf16.msra.mxu0 %v1785
        %1870 = vmatprep.subr.bf16.mxu0 0
        %1871 = vmatpush2.bf16.msra.mxu0 %v1784
        %1872 = vmatprep.mubr.bf16.mxu0 %v1574
        %1873 = vmatmul.mubr.bf16.gmra.mxu0 %v1573
        %v1874 = vpop.f32.mrf.mxu0
        %v1875 = vadd.f32 %v1646, %v1874
        %v1876 = vpop.f32.mrf.mxu0
        %v1877 = vpop.f32.mrf.mxu0
        %v1878 = vadd.f32 %v1646, %v1877
        %v1879 = vpop.f32.mrf.mxu0
        %1880 = vdwg.mxu0
        %1881 = vmatprep.subr.bf16.mxu0 0
        %1882 = vmatpush1.bf16.msra.mxu0 %v1799
        %1883 = vmatprep.subr.bf16.mxu0 0
        %1884 = vmatpush1.bf16.msra.mxu0 %v1798
        %1885 = vmatprep.subr.bf16.mxu0 0
        %1886 = vmatpush1.bf16.msra.mxu0 %v1797
        %1887 = vmatprep.subr.bf16.mxu0 0
        %1888 = vmatpush1.bf16.msra.mxu0 %v1796
        %1889 = vmatprep.subr.bf16.mxu0 0
        %1890 = vmatpush1.bf16.msra.mxu0 %v1795
        %1891 = vmatprep.subr.bf16.mxu0 0
        %1892 = vmatpush1.bf16.msra.mxu0 %v1794
        %1893 = vmatprep.subr.bf16.mxu0 0
        %1894 = vmatpush1.bf16.msra.mxu0 %v1793
        %1895 = vmatprep.subr.bf16.mxu0 0
        %1896 = vmatpush1.bf16.msra.mxu0 %v1792
        %1897 = vmatprep.subr.bf16.mxu0 0
        %1898 = vmatpush2.bf16.msra.mxu0 %v1807
        %1899 = vmatprep.subr.bf16.mxu0 0
        %1900 = vmatpush2.bf16.msra.mxu0 %v1806
        %1901 = vmatprep.subr.bf16.mxu0 0
        %1902 = vmatpush2.bf16.msra.mxu0 %v1805
        %1903 = vmatprep.subr.bf16.mxu0 0
        %1904 = vmatpush2.bf16.msra.mxu0 %v1804
        %1905 = vmatprep.subr.bf16.mxu0 0
        %1906 = vmatpush2.bf16.msra.mxu0 %v1803
        %1907 = vmatprep.subr.bf16.mxu0 0
        %1908 = vmatpush2.bf16.msra.mxu0 %v1802
        %1909 = vmatprep.subr.bf16.mxu0 0
        %1910 = vmatpush2.bf16.msra.mxu0 %v1801
        %1911 = vmatprep.subr.bf16.mxu0 0
        %1912 = vmatpush2.bf16.msra.mxu0 %v1800
        %1913 = vmatprep.mubr.bf16.mxu0 %v1576
        %1914 = vmatmul.mubr.bf16.gmra.mxu0 %v1575
        %v1915 = vpop.f32.mrf.mxu0
        %v1916 = vadd.f32 %v1875, %v1915
        %v1917 = vpop.f32.mrf.mxu0
        %v1918 = vpop.f32.mrf.mxu0
        %v1919 = vadd.f32 %v1878, %v1918
        %v1920 = vpop.f32.mrf.mxu0
        %1921 = vdwg.mxu0
        %1922 = vst [vmem:[%s481] sm:$0xff] %v1916
        %1923 = vst [vmem:[%s481 + $0x8] sm:$0xff] %v1919
        %s1924 = smul.u32 2, %s25
        %p1925 = scmp.lt.s32.totalorder %s1924, 3
        %s1926 = scalar_select %p1925, %s1924, 3
        %s1927 = smul.addr %s1926, 8
        %s1928 = scalar_lea.vmem %s12, %s1927
        // Predicated region
        $region81: #{vm_decoder_forward.5} parent=67 // pred_check
          %p1929 = pneg %p305
        $region82: #{vm_decoder_forward.5} parent=67 // pred_check_branch
          %1931 = sbr.rel (%p1929) target = $region84
        $region83: #{vm_decoder_forward.5} parent=67 // pred_region
          %s1932 = smul.u32 2, %s25
        $region84: #{vm_decoder_forward.5} parent=67 // pred_fallthru
          _
      $region68: #{vm_decoder_forward.5} parent=5 // pred_fallthru
        _
      %p1933 = scmp.le.s32.totalorder 2, %s20
      // Predicated region
      $region85: #{vm_decoder_forward.5} parent=5 // pred_check
        %p1934 = pneg %p1933
      $region86: #{vm_decoder_forward.5} parent=5 // pred_check_branch
        %1936 = sbr.rel (%p1934) target = $region88
      $region87: #{vm_decoder_forward.5} parent=5 // pred_region
        %s1937 = ssub.s32 %s20, 2
        // Predicated region
        $region89: #{vm_decoder_forward.5} parent=87 // pred_check
          %p1938 = pneg %p311
        $region90: #{vm_decoder_forward.5} parent=87 // pred_check_branch
          %1940 = sbr.rel (%p1938) target = $region92
        $region91: #{vm_decoder_forward.5} parent=87 // pred_region
          %s1941 = smul.u32 2, %s26
          %p1942 = scmp.lt.s32.totalorder %s1941, 3
          %s1943 = scalar_select %p1942, %s1941, 3
          %s1944 = smul.addr %s1943, 8
          %s1945 = scalar_lea.vmem %s12, %s1944
        $region92: #{vm_decoder_forward.5} parent=87 // pred_fallthru
          _
      $region88: #{vm_decoder_forward.5} parent=5 // pred_fallthru
        _
    $region6: #{vm_decoder_forward.5} parent=1 // loop_footer
      %s24 = sadd.s32 1, %s20
    $region7: #{vm_decoder_forward.5} parent=1 // loop_footer_branch
      %19 = sbr.rel target = $region3
    $region8: #{vm_decoder_forward.5} parent=1 // loop_exit
      _
    %1946 = vsyncpa [#allocation3], 1
    %s1947 = scalar_lea.sflag [#allocation3], 1
    %1948 = vsyncpa %s1947, 1
    %1949 = vsyncpa [#allocation5], 1

</llo_original>
